<compile_context>
chip_gen: v7x
topology: tpu7x:2x2x1
jax: 0.10.0
libtpu: 0.0.40
codegen_flags: <defaults>
</compile_context>

<pallas_src>
import functools

import jax
import jax.numpy as jnp
from jax import lax
from jax.experimental import pallas as pl
from jax.experimental.pallas import tpu as pltpu


# -----------------------------------------------------------------------------
# Pallas kernel: single-pass (M,K)x(K,N) matmul + bias.
# Full K / full N per block, 1-D grid over M, bf16 MXU operands, f32 accumulate.
# -----------------------------------------------------------------------------
def _mm_bias_kernel(a_ref, w_ref, b_ref, o_ref):
    acc = jnp.dot(a_ref[...], w_ref[...],               # bf16 x bf16 on the MXU
                  preferred_element_type=jnp.float32)   # f32 accumulation
    o_ref[...] = (acc + b_ref[...]).astype(o_ref.dtype)  # bias in f32 epilogue


def _round_up(x, m):
    return ((x + m - 1) // m) * m


def _pick_tm(m):
    """Single M block for small GEMMs (v5e/v6e are single-TC: the grid is a
    serial loop, so extra steps are pure overhead).  Split M in two only when
    there is enough work for v7x's second TensorCore (conv3: 576 -> 2 x 288)."""
    if m % 8 != 0:
        return None
    if m >= 512 and (m // 2) % 8 == 0:
        return m // 2
    return m


def pallas_matmul_bias(a, w, bias_row):
    """a: (M,K) f32/bf16; w: (K,N) bf16 (N pre-padded to a multiple of 128 at
    prep time); bias_row: (1,N) f32.  Returns (M,N) f32."""
    a = a.astype(jnp.bfloat16)            # no-op if already bf16; halves LHS DMA
    M, K = a.shape
    K2, N = w.shape
    assert K == K2 and bias_row.shape == (1, N)

    tm = _pick_tm(M)
    if tm is None:
        # Ragged-M fallback (never hit by this module's shapes) — one zero pad.
        Mpad = _round_up(M, 8)
        a = jnp.pad(a, ((0, Mpad - M), (0, 0)))
        tm = Mpad
    else:
        Mpad = M

    out = pl.pallas_call(
        _mm_bias_kernel,
        out_shape=jax.ShapeDtypeStruct((Mpad, N), jnp.float32),
        grid=(Mpad // tm,),
        in_specs=[
            pl.BlockSpec((tm, K), lambda i: (i, 0)),   # LHS row tile, full K
            pl.BlockSpec((K, N), lambda i: (0, 0)),    # whole weight (bf16)
            pl.BlockSpec((1, N), lambda i: (0, 0)),    # bias row (f32)
        ],
        out_specs=pl.BlockSpec((tm, N), lambda i: (i, 0)),
        compiler_params=pltpu.CompilerParams(
            dimension_semantics=("parallel",)),        # shards M across v7x TCs
    )(a, w, bias_row)
    return out[:M] if Mpad != M else out


# -----------------------------------------------------------------------------
# JAX glue (data movement only): NHWC fold / unfold (with pixel-shuffle fast
# path), im2col, bilinear resize, and the two near-empty convs.
# -----------------------------------------------------------------------------
def _t2t_nonoverlapping(kernel_size, padding, stride, output_size):
    kh, kw = kernel_size
    return (tuple(kernel_size) == tuple(stride)
            and tuple(padding) == (0, 0)
            and output_size[0] % kh == 0 and output_size[1] % kw == 0)


def fold_nhwc(tokens, output_size, kernel_size, padding, stride):
    """tokens: (B, L, C*kh*kw), channel index c*kh*kw + i*kw + j (PyTorch order)
       -> (B, H, W, C); matches torch.nn.functional.fold."""
    B, L, CKK = tokens.shape
    kh, kw = kernel_size
    ph, pw = padding
    sh, sw = stride
    C = CKK // (kh * kw)
    H, W = output_size
    nH = (H + 2 * ph - kh) // sh + 1
    nW = (W + 2 * pw - kw) // sw + 1
    assert L == nH * nW
    p = tokens.reshape(B, nH, nW, C, kh, kw)
    if _t2t_nonoverlapping(kernel_size, padding, stride, output_size):
        # non-overlapping, no padding -> pure pixel shuffle (reshape+transpose)
        return p.transpose(0, 1, 4, 2, 5, 3).reshape(B, nH * kh, nW * kw, C)
    out = jnp.zeros((B, H + 2 * ph, W + 2 * pw, C), tokens.dtype)
    for i in range(kh):
        for j in range(kw):
            out = out.at[:, i:i + sh * nH:sh, j:j + sw * nW:sw, :].add(p[:, :, :, :, i, j])
    return out[:, ph:H + ph, pw:W + pw, :]


def unfold_nhwc(x, kernel_size, padding, stride):
    """x: (B,H,W,C) -> (B, L, C*kh*kw) with PyTorch channel order c*kh*kw + i*kw + j."""
    B, H, W, C = x.shape
    kh, kw = kernel_size
    ph, pw = padding
    sh, sw = stride
    nH = (H + 2 * ph - kh) // sh + 1
    nW = (W + 2 * pw - kw) // sw + 1
    if _t2t_nonoverlapping(kernel_size, padding, stride, (H, W)):
        p = x.reshape(B, nH, kh, nW, kw, C)
        return p.transpose(0, 1, 3, 5, 2, 4).reshape(B, nH * nW, C * kh * kw)
    xp = jnp.pad(x, ((0, 0), (ph, ph), (pw, pw), (0, 0)))
    cols = [xp[:, i:i + sh * nH:sh, j:j + sw * nW:sw, :]
            for i in range(kh) for j in range(kw)]
    patches = jnp.stack(cols, axis=-1)                 # (B,nH,nW,C,kh*kw)
    return patches.reshape(B, nH * nW, C * kh * kw)


def _im2col_nhwc(x, k, stride, pad, k_total):
    """x: (B,H,W,C) -> A: (B*Ho*Wo, k_total) with K order (i, j, c), zero-padded
    to k_total columns (alignment) inside the existing concatenate."""
    B, H, W, C = x.shape
    xp = jnp.pad(x, ((0, 0), (pad, pad), (pad, pad), (0, 0)))
    Ho = (H + 2 * pad - k) // stride + 1
    Wo = (W + 2 * pad - k) // stride + 1
    cols = [xp[:, i:i + stride * Ho:stride, j:j + stride * Wo:stride, :]
            for i in range(k) for j in range(k)]
    extra = k_total - C * k * k
    if extra > 0:
        cols.append(jnp.zeros((B, Ho, Wo, extra), x.dtype))
    A = jnp.concatenate(cols, axis=-1).reshape(B * Ho * Wo, k_total)
    return A, Ho, Wo


def conv3_pallas(x, w_mat, bias_row, n_out, *, k=3, stride=1, pad=1):
    """x: (B,H,W,Cin) NHWC; w_mat: (Kpad, Npad) bf16; bias_row: (1,Npad) f32."""
    B = x.shape[0]
    A, Ho, Wo = _im2col_nhwc(x.astype(jnp.bfloat16), k, stride, pad, w_mat.shape[0])
    out = pallas_matmul_bias(A, w_mat, bias_row)       # (B*Ho*Wo, Npad) f32
    return out[:, :n_out].reshape(B, Ho, Wo, n_out)


def conv2d_small_nhwc(x, w_hwio, bias, *, stride, pad):
    """Tiny convs (conv1/conv2): plain XLA conv in NHWC — a GEMM would be ~empty."""
    out = lax.conv_general_dilated(
        x, w_hwio, window_strides=(stride, stride),
        padding=[(pad, pad), (pad, pad)],
        dimension_numbers=('NHWC', 'HWIO', 'NHWC'))
    return out + bias.reshape(1, 1, 1, -1)


def upsample_bilinear_ac_nhwc(x, scale):
    """x: (B,H,W,C) -> (B,H*scale,W*scale,C); F.interpolate bilinear, align_corners=True."""
    B, H, W, C = x.shape
    Ho, Wo = int(H * scale), int(W * scale)

    def grid1d(inp, out):
        if out <= 1 or inp <= 1:
            z = jnp.zeros((out,), jnp.float32)
            return z, jnp.zeros((out,), jnp.int32), jnp.zeros((out,), jnp.int32)
        pos = jnp.arange(out, dtype=jnp.float32) * (inp - 1) / (out - 1)
        i0 = jnp.clip(jnp.floor(pos).astype(jnp.int32), 0, inp - 2)
        return pos - i0.astype(jnp.float32), i0, i0 + 1

    fy, y0, y1 = grid1d(H, Ho)
    fx, x0, x1 = grid1d(W, Wo)
    top = (x[:, y0, :, :] * (1.0 - fy)[None, :, None, None]
           + x[:, y1, :, :] * fy[None, :, None, None])
    out = (top[:, :, x0, :] * (1.0 - fx)[None, None, :, None]
           + top[:, :, x1, :] * fx[None, None, :, None])
    return out


# -----------------------------------------------------------------------------
# One-time parameter preparation (PyTorch-layout f32 -> kernel-ready layouts).
# -----------------------------------------------------------------------------
def prepare_params(raw):
    def pad_cols(w, b, n_to):
        K, N = w.shape
        if N < n_to:                       # lane-dense output -> unmasked vst
            w = jnp.pad(w, ((0, 0), (0, n_to - N)))
            b = jnp.pad(b, ((0, n_to - N),))
        return w, b

    p = {}
    # fc1: (dim, hidden); pad N (360 -> 384) so every output store is unmasked.
    w, bb = pad_cols(raw['fc1_w'], raw['fc1_b'],
                     _round_up(raw['fc1_w'].shape[1], 128))
    p['fc1_w'] = w.astype(jnp.bfloat16)
    p['fc1_b'] = bb.astype(jnp.float32).reshape(1, -1)
    # fc2: (hidden, dim); pad N to 128.  K stays unpadded (its static shape is
    # also how the forward recovers hidden_dim under jit).
    w, bb = pad_cols(raw['fc2_w'], raw['fc2_b'],
                     _round_up(raw['fc2_w'].shape[1], 128))
    p['fc2_w'] = w.astype(jnp.bfloat16)
    p['fc2_b'] = bb.astype(jnp.float32).reshape(1, -1)
    # conv1 / conv2: OIHW -> HWIO f32 for lax.conv in NHWC
    p['conv1_w'] = raw['conv1_w'].transpose(2, 3, 1, 0).astype(jnp.float32)
    p['conv1_b'] = raw['conv1_b'].astype(jnp.float32)
    p['conv2_w'] = raw['conv2_w'].transpose(2, 3, 1, 0).astype(jnp.float32)
    p['conv2_b'] = raw['conv2_b'].astype(jnp.float32)
    # conv3: OIHW (Cout,Cin,kh,kw) -> GEMM matrix (kh*kw*Cin, Cout), K order (i,j,c);
    # pad K 378 -> 384 (zero rows) and N 40 -> 128 (zero cols) — mathematically inert.
    cw = raw['conv3_w']
    Cout, Cin, kh, kw = cw.shape
    wm = cw.transpose(2, 3, 1, 0).reshape(kh * kw * Cin, Cout)
    Kpad = _round_up(kh * kw * Cin, 128)
    wm = jnp.pad(wm, ((0, Kpad - kh * kw * Cin), (0, 0)))
    wm, cb = pad_cols(wm, raw['conv3_b'], _round_up(Cout, 128))
    p['conv3_w'] = wm.astype(jnp.bfloat16)
    p['conv3_b'] = cb.astype(jnp.float32).reshape(1, -1)
    return p


# -----------------------------------------------------------------------------
# Full forward pass (NHWC image layout throughout).
# -----------------------------------------------------------------------------
def spatial_detail_enhancement(x, params, t2t_params, output_size):
    kernel_size = tuple(t2t_params['kernel_size'])
    padding = tuple(t2t_params['padding'])
    stride = tuple(t2t_params['stride'])
    kernel_shape = kernel_size[0] * kernel_size[1]

    n_vecs = 1
    for i, d in enumerate(kernel_size):
        n_vecs *= int((output_size[i] + 2 * padding[i] - (d - 1) - 1) / stride[i] + 1)

    b, n, dim = x.shape
    hidden = params['fc2_w'].shape[0]                  # static hidden_dim (360)
    Bp = (b * n) // n_vecs
    fast = _t2t_nonoverlapping(kernel_size, padding, stride, output_size)

    # fc1 (Pallas GEMM + bias); N is padded to 384 -> one cheap slice back to 360.
    h = pallas_matmul_bias(x.reshape(b * n, dim),
                           params['fc1_w'], params['fc1_b'])[:, :hidden]
    c = hidden

    # fold tokens into an image (Bp, H, W, 40)  — pixel shuffle on the fast path
    x_img = fold_nhwc(h.reshape(Bp, n_vecs, c), output_size,
                      kernel_size, padding, stride)

    # channel mean / max (lane-dim reduction, plain JAX)
    x0 = jnp.concatenate([x_img.mean(axis=-1, keepdims=True),
                          x_img.max(axis=-1, keepdims=True)], axis=-1)   # (Bp,H,W,2)

    # conv1 (2->1, k3 s2 p1) and conv2 = GELU + conv (1->1, k3 s2 p1): tiny, plain XLA
    y1 = conv2d_small_nhwc(x0, params['conv1_w'], params['conv1_b'], stride=2, pad=1)
    y2 = conv2d_small_nhwc(jax.nn.gelu(y1, approximate=False),
                           params['conv2_w'], params['conv2_b'], stride=2, pad=1)
    y1u = upsample_bilinear_ac_nhwc(y1, 2)
    y2u = upsample_bilinear_ac_nhwc(y2, 4)

    # conv3 (42->40, k3 s1 p1) — the only GEMM with real volume — via Pallas
    z = jnp.concatenate([x_img, y1u, y2u], axis=-1)                      # (Bp,H,W,42)
    z = conv3_pallas(z, params['conv3_w'], params['conv3_b'],
                     n_out=c // kernel_shape, k=3, stride=1, pad=1)

    if not fast:
        # Overlapping / padded t2t config: need the fold(ones) normalizer.
        # TODO(synk): fuse 1/normalizer into the conv3 Pallas epilogue as a
        # (M,1) row-scale input to save this HBM round-trip in the general case.
        ones_tok = jnp.ones((Bp, n_vecs, kernel_shape), jnp.float32)
        normalizer = fold_nhwc(ones_tok, output_size, kernel_size, padding, stride)
        z = z / normalizer
    # fast path: normalizer == 1 identically -> no fold, no divide.

    # unfold back to tokens, exact (erf) GELU, then fc2 Pallas GEMM.
    u = unfold_nhwc(z, kernel_size, padding, stride).reshape(b * n, c)
    u = jax.nn.gelu(u, approximate=False)              # f32 GELU, cast to bf16 in wrapper
    out = pallas_matmul_bias(u, params['fc2_w'], params['fc2_b'])[:, :dim]
    return out.reshape(b, n, dim)


# -----------------------------------------------------------------------------
# Main
# -----------------------------------------------------------------------------
if __name__ == "__main__":
    # small, self-consistent configuration:
    #   kernel_shape = 3*3 = 9 -> hidden_dim = 40*9 = 360 (conv3 expects 40+1+1=42 in-ch)
    dim = 32
    t2t_params = {'kernel_size': (3, 3), 'padding': (0, 0), 'stride': (3, 3)}
    output_size = (12, 12)
    hidden_dim = 40 * 9

    n_vecs = 1
    for i, d in enumerate(t2t_params['kernel_size']):
        n_vecs *= int((output_size[i] + 2 * t2t_params['padding'][i] - (d - 1) - 1)
                      / t2t_params['stride'][i] + 1)          # 16
    b, t = 2, 2
    n = t * n_vecs                                            # 32

    key = jax.random.PRNGKey(0)
    ks = jax.random.split(key, 12)

    def init_w(k, shape, fan_in):
        return jax.random.normal(k, shape, jnp.float32) / jnp.sqrt(float(fan_in))

    raw_params = {
        'fc1_w': init_w(ks[0], (dim, hidden_dim), dim),
        'fc1_b': 0.01 * jax.random.normal(ks[1], (hidden_dim,), jnp.float32),
        'fc2_w': init_w(ks[2], (hidden_dim, dim), hidden_dim),
        'fc2_b': 0.01 * jax.random.normal(ks[3], (dim,), jnp.float32),
        'conv1_w': init_w(ks[4], (1, 2, 3, 3), 2 * 9),
        'conv1_b': 0.01 * jax.random.normal(ks[5], (1,), jnp.float32),
        'conv2_w': init_w(ks[6], (1, 1, 3, 3), 1 * 9),
        'conv2_b': 0.01 * jax.random.normal(ks[7], (1,), jnp.float32),
        'conv3_w': init_w(ks[8], (40, 42, 3, 3), 42 * 9),
        'conv3_b': 0.01 * jax.random.normal(ks[9], (40,), jnp.float32),
    }
    params = prepare_params(raw_params)      # one-time layout / dtype / padding prep

    x = jax.random.normal(ks[10], (b, n, dim), jnp.float32)

    fwd = jax.jit(functools.partial(spatial_detail_enhancement,
                                    t2t_params=t2t_params, output_size=output_size))
    out = jax.block_until_ready(fwd(x, params))

    assert out.shape == (b, n, dim), out.shape
    assert bool(jnp.all(jnp.isfinite(out)))
    print("KERNEL_OK")
</pallas_src>

<mosaic_0001>
module attributes {stable_mosaic.version = 11 : i64} {
  func.func @_mm_bias_kernel(%arg0: i32, %arg1: memref<64x32xbf16, #tpu.memory_space<vmem>>, %arg2: memref<32x384xbf16, #tpu.memory_space<vmem>>, %arg3: memref<1x384xf32, #tpu.memory_space<vmem>>, %arg4: memref<64x384xf32, #tpu.memory_space<vmem>>) attributes {dimension_semantics = [#tpu.dimension_semantics<parallel>], iteration_bounds = array<i64: 1>, scalar_prefetch = 0 : i64, scratch_operands = 0 : i64, tpu.core_type = #tpu.core_type<tc>, window_params = [{transform_indices = @transform_0, window_bounds = array<i64: 64, 32>}, {pipeline_mode = #tpu.pipeline_mode<synchronous>, transform_indices = @transform_1, window_bounds = array<i64: 32, 384>}, {pipeline_mode = #tpu.pipeline_mode<synchronous>, transform_indices = @transform_2, window_bounds = array<i64: 1, 384>}, {transform_indices = @transform_3, window_bounds = array<i64: 64, 384>}]} {
    %c0 = arith.constant 0 : index
    %c0_0 = arith.constant 0 : index
    %0 = vector.load %arg1[%c0, %c0_0] : memref<64x32xbf16, #tpu.memory_space<vmem>>, vector<64x32xbf16>
    %c0_1 = arith.constant 0 : index
    %c0_2 = arith.constant 0 : index
    %1 = vector.load %arg2[%c0_1, %c0_2] : memref<32x384xbf16, #tpu.memory_space<vmem>>, vector<32x384xbf16>
    %cst = arith.constant dense<0.000000e+00> : vector<64x384xf32>
    %2 = tpu.matmul %0, %1, %cst {dimension_numbers = #tpu.dot_dimension_numbers<[1], [0], [0], [1], [0, 0, 1, 1], [], []>} : vector<64x32xbf16>, vector<32x384xbf16>, vector<64x384xf32> -> vector<64x384xf32>
    %c0_3 = arith.constant 0 : index
    %c0_4 = arith.constant 0 : index
    %3 = vector.load %arg3[%c0_3, %c0_4] : memref<1x384xf32, #tpu.memory_space<vmem>>, vector<1x384xf32>
    %4 = vector.broadcast %3 : vector<1x384xf32> to vector<64x384xf32>
    %5 = arith.addf %2, %4 : vector<64x384xf32>
    %c0_5 = arith.constant 0 : index
    %c0_6 = arith.constant 0 : index
    %6 = vector.load %arg4[%c0_5, %c0_6] : memref<64x384xf32, #tpu.memory_space<vmem>>, vector<64x384xf32>
    tpu.vector_store %arg4[%c0_5, %c0_6], %5 {strides = array<i32>} : memref<64x384xf32, #tpu.memory_space<vmem>>, vector<64x384xf32>,
    return
  }
  func.func @transform_0(%arg0: i32) -> (i32, i32) {
    %c0_i32 = arith.constant 0 : i32
    %c0_i32_0 = arith.constant 0 : i32
    return %arg0, %c0_i32 : i32, i32
  }
  func.func @transform_1(%arg0: i32) -> (i32, i32) {
    %c0_i32 = arith.constant 0 : i32
    %c0_i32_0 = arith.constant 0 : i32
    %c0_i32_1 = arith.constant 0 : i32
    return %c0_i32, %c0_i32_0 : i32, i32
  }
  func.func @transform_2(%arg0: i32) -> (i32, i32) {
    %c0_i32 = arith.constant 0 : i32
    %c0_i32_0 = arith.constant 0 : i32
    %c0_i32_1 = arith.constant 0 : i32
    return %c0_i32, %c0_i32_0 : i32, i32
  }
  func.func @transform_3(%arg0: i32) -> (i32, i32) {
    %c0_i32 = arith.constant 0 : i32
    %c0_i32_0 = arith.constant 0 : i32
    return %arg0, %c0_i32 : i32, i32
  }
}

module attributes {stable_mosaic.version = 11 : i64} {
  func.func @_mm_bias_kernel(%arg0: i32, %arg1: memref<288x384xbf16, #tpu.memory_space<vmem>>, %arg2: memref<384x128xbf16, #tpu.memory_space<vmem>>, %arg3: memref<1x128xf32, #tpu.memory_space<vmem>>, %arg4: memref<288x128xf32, #tpu.memory_space<vmem>>) attributes {dimension_semantics = [#tpu.dimension_semantics<parallel>], iteration_bounds = array<i64: 2>, scalar_prefetch = 0 : i64, scratch_operands = 0 : i64, tpu.core_type = #tpu.core_type<tc>, window_params = [{transform_indices = @transform_0, window_bounds = array<i64: 288, 384>}, {pipeline_mode = #tpu.pipeline_mode<synchronous>, transform_indices = @transform_1, window_bounds = array<i64: 384, 128>}, {pipeline_mode = #tpu.pipeline_mode<synchronous>, transform_indices = @transform_2, window_bounds = array<i64: 1, 128>}, {transform_indices = @transform_3, window_bounds = array<i64: 288, 128>}]} {
    %c0 = arith.constant 0 : index
    %c0_0 = arith.constant 0 : index
    %0 = vector.load %arg1[%c0, %c0_0] : memref<288x384xbf16, #tpu.memory_space<vmem>>, vector<288x384xbf16>
    %c0_1 = arith.constant 0 : index
    %c0_2 = arith.constant 0 : index
    %1 = vector.load %arg2[%c0_1, %c0_2] : memref<384x128xbf16, #tpu.memory_space<vmem>>, vector<384x128xbf16>
    %cst = arith.constant dense<0.000000e+00> : vector<288x128xf32>
    %2 = tpu.matmul %0, %1, %cst {dimension_numbers = #tpu.dot_dimension_numbers<[1], [0], [0], [1], [0, 0, 1, 1], [], []>} : vector<288x384xbf16>, vector<384x128xbf16>, vector<288x128xf32> -> vector<288x128xf32>
    %c0_3 = arith.constant 0 : index
    %c0_4 = arith.constant 0 : index
    %3 = vector.load %arg3[%c0_3, %c0_4] : memref<1x128xf32, #tpu.memory_space<vmem>>, vector<1x128xf32>
    %4 = vector.broadcast %3 : vector<1x128xf32> to vector<288x128xf32>
    %5 = arith.addf %2, %4 : vector<288x128xf32>
    %c0_5 = arith.constant 0 : index
    %c0_6 = arith.constant 0 : index
    %6 = vector.load %arg4[%c0_5, %c0_6] : memref<288x128xf32, #tpu.memory_space<vmem>>, vector<288x128xf32>
    tpu.vector_store %arg4[%c0_5, %c0_6], %5 {strides = array<i32>} : memref<288x128xf32, #tpu.memory_space<vmem>>, vector<288x128xf32>,
    return
  }
  func.func @transform_0(%arg0: i32) -> (i32, i32) {
    %c0_i32 = arith.constant 0 : i32
    %c0_i32_0 = arith.constant 0 : i32
    return %arg0, %c0_i32 : i32, i32
  }
  func.func @transform_1(%arg0: i32) -> (i32, i32) {
    %c0_i32 = arith.constant 0 : i32
    %c0_i32_0 = arith.constant 0 : i32
    %c0_i32_1 = arith.constant 0 : i32
    return %c0_i32, %c0_i32_0 : i32, i32
  }
  func.func @transform_2(%arg0: i32) -> (i32, i32) {
    %c0_i32 = arith.constant 0 : i32
    %c0_i32_0 = arith.constant 0 : i32
    %c0_i32_1 = arith.constant 0 : i32
    return %c0_i32, %c0_i32_0 : i32, i32
  }
  func.func @transform_3(%arg0: i32) -> (i32, i32) {
    %c0_i32 = arith.constant 0 : i32
    %c0_i32_0 = arith.constant 0 : i32
    return %arg0, %c0_i32 : i32, i32
  }
}

module attributes {stable_mosaic.version = 11 : i64} {
  func.func @_mm_bias_kernel(%arg0: i32, %arg1: memref<64x360xbf16, #tpu.memory_space<vmem>>, %arg2: memref<360x128xbf16, #tpu.memory_space<vmem>>, %arg3: memref<1x128xf32, #tpu.memory_space<vmem>>, %arg4: memref<64x128xf32, #tpu.memory_space<vmem>>) attributes {dimension_semantics = [#tpu.dimension_semantics<parallel>], iteration_bounds = array<i64: 1>, scalar_prefetch = 0 : i64, scratch_operands = 0 : i64, tpu.core_type = #tpu.core_type<tc>, window_params = [{transform_indices = @transform_0, window_bounds = array<i64: 64, 360>}, {pipeline_mode = #tpu.pipeline_mode<synchronous>, transform_indices = @transform_1, window_bounds = array<i64: 360, 128>}, {pipeline_mode = #tpu.pipeline_mode<synchronous>, transform_indices = @transform_2, window_bounds = array<i64: 1, 128>}, {transform_indices = @transform_3, window_bounds = array<i64: 64, 128>}]} {
    %c0 = arith.constant 0 : index
    %c0_0 = arith.constant 0 : index
    %0 = vector.load %arg1[%c0, %c0_0] : memref<64x360xbf16, #tpu.memory_space<vmem>>, vector<64x360xbf16>
    %c0_1 = arith.constant 0 : index
    %c0_2 = arith.constant 0 : index
    %1 = vector.load %arg2[%c0_1, %c0_2] : memref<360x128xbf16, #tpu.memory_space<vmem>>, vector<360x128xbf16>
    %cst = arith.constant dense<0.000000e+00> : vector<64x128xf32>
    %2 = tpu.matmul %0, %1, %cst {dimension_numbers = #tpu.dot_dimension_numbers<[1], [0], [0], [1], [0, 0, 1, 1], [], []>} : vector<64x360xbf16>, vector<360x128xbf16>, vector<64x128xf32> -> vector<64x128xf32>
    %c0_3 = arith.constant 0 : index
    %c0_4 = arith.constant 0 : index
    %3 = vector.load %arg3[%c0_3, %c0_4] : memref<1x128xf32, #tpu.memory_space<vmem>>, vector<1x128xf32>
    %4 = vector.broadcast %3 : vector<1x128xf32> to vector<64x128xf32>
    %5 = arith.addf %2, %4 : vector<64x128xf32>
    %c0_5 = arith.constant 0 : index
    %c0_6 = arith.constant 0 : index
    %6 = vector.load %arg4[%c0_5, %c0_6] : memref<64x128xf32, #tpu.memory_space<vmem>>, vector<64x128xf32>
    tpu.vector_store %arg4[%c0_5, %c0_6], %5 {strides = array<i32>} : memref<64x128xf32, #tpu.memory_space<vmem>>, vector<64x128xf32>,
    return
  }
  func.func @transform_0(%arg0: i32) -> (i32, i32) {
    %c0_i32 = arith.constant 0 : i32
    %c0_i32_0 = arith.constant 0 : i32
    return %arg0, %c0_i32 : i32, i32
  }
  func.func @transform_1(%arg0: i32) -> (i32, i32) {
    %c0_i32 = arith.constant 0 : i32
    %c0_i32_0 = arith.constant 0 : i32
    %c0_i32_1 = arith.constant 0 : i32
    return %c0_i32, %c0_i32_0 : i32, i32
  }
  func.func @transform_2(%arg0: i32) -> (i32, i32) {
    %c0_i32 = arith.constant 0 : i32
    %c0_i32_0 = arith.constant 0 : i32
    %c0_i32_1 = arith.constant 0 : i32
    return %c0_i32, %c0_i32_0 : i32, i32
  }
  func.func @transform_3(%arg0: i32) -> (i32, i32) {
    %c0_i32 = arith.constant 0 : i32
    %c0_i32_0 = arith.constant 0 : i32
    return %arg0, %c0_i32 : i32, i32
  }
}

</mosaic_0001>

<llo_original>
// kernel: spatial_detail_enhancement.3
$region0: #{spatial_detail_enhancement.3}
  #allocation0 [shape = 'u32[]', space=smem, size = 0x4, offset = 0x4, fixed_abs, tag = 'smem constant byte address 0x4 - core index']
  #allocation1 [shape = 'u32[144,128]{1,0:T(1,128)}', space=vmem, size = 0x12000, scoped, tag = 'internal scratch']
  %s0 = inlined_call_operand.vmem [shape: bf16[64,32], index: 0, kind: input, shape index: {}]
  %s1 = inlined_call_operand.hbm [shape: bf16[32,384], index: 1, kind: input, shape index: {}]
  %s2 = inlined_call_operand.hbm [shape: f32[1,384], index: 2, kind: input, shape index: {}]
  %s3 = inlined_call_operand.vmem [shape: f32[64,384], index: 3, kind: output, shape index: {}]
  %s4 = sld [smem:[#allocation0]]
  $region30: #{spatial_detail_enhancement.3} parent=0
    _
  %s6 = ssub.s32 1, %s4
  %s7 = scalar_select 0, %s6, %s4
  $region1: #{spatial_detail_enhancement.3} parent=0
    #allocation2 [shape = 'u8[24576]{0}', space=vmem, size = 0x6000, scoped, tag = 'input window, operand 1, single buffered']
    #allocation3 [shape = 's32[1]{0}', space=sflag, size = 0x4, scoped, tag = 'scoped memory for spatial_detail_enhancement.3']
    #allocation4 [shape = 'u8[1536]{0}', space=vmem, size = 0x800, scoped, tag = 'input window, operand 2, single buffered']
    #allocation5 [shape = 's32[1]{0}', space=sflag, size = 0x4, scoped, tag = 'scoped memory for spatial_detail_enhancement.3']
    %8 = vsyncpa [#allocation3], 0
    %9 = vsyncpa [#allocation5], 0
    // Predicated region
    $region2: #{spatial_detail_enhancement.3} parent=1 // pred_check
      _
    $region3: #{spatial_detail_enhancement.3} parent=1 // pred_check_branch
      %11 = sbr.rel (0) target = $region5
    $region4: #{spatial_detail_enhancement.3} parent=1 // pred_region
      _
    $region5: #{spatial_detail_enhancement.3} parent=1 // pred_fallthru
      _
    // Predicated region
    $region6: #{spatial_detail_enhancement.3} parent=1 // pred_check
      _
    $region7: #{spatial_detail_enhancement.3} parent=1 // pred_check_branch
      %13 = sbr.rel (0) target = $region9
    $region8: #{spatial_detail_enhancement.3} parent=1 // pred_region
      %s15 = ssub.s32 768, 768
      %16 = vsyncadd [#allocation3], %s15
      %s17 = sshll.u32 [#allocation2], 4
      %s18 = int_to_ptr.vmem [resolvable:$true] %s17
      %23 = dma.hbm_to_vmem [thread:$0]  %s1, 768, %s18, [#allocation3], 192, 192, 12
    $region9: #{spatial_detail_enhancement.3} parent=1 // pred_fallthru
      _
    // Predicated region
    $region10: #{spatial_detail_enhancement.3} parent=1 // pred_check
      _
    $region11: #{spatial_detail_enhancement.3} parent=1 // pred_check_branch
      %25 = sbr.rel (0) target = $region13
    $region12: #{spatial_detail_enhancement.3} parent=1 // pred_region
      %s27 = ssub.s32 48, 48
      %28 = vsyncadd [#allocation5], %s27
      %s30 = sshll.u32 [#allocation4], 4
      %s31 = int_to_ptr.vmem [resolvable:$true] %s30
      %33 = dma.hbm_to_vmem [thread:$0]  %s2, 48, %s31, [#allocation5]
    $region13: #{spatial_detail_enhancement.3} parent=1 // pred_fallthru
      _
    // Predicated region
    $region14: #{spatial_detail_enhancement.3} parent=1 // pred_check
      _
    $region15: #{spatial_detail_enhancement.3} parent=1 // pred_check_branch
      %35 = sbr.rel (0) target = $region17
    $region16: #{spatial_detail_enhancement.3} parent=1 // pred_region
      %36 = dma.done [#allocation3], 768
    $region17: #{spatial_detail_enhancement.3} parent=1 // pred_fallthru
      _
    // Predicated region
    $region18: #{spatial_detail_enhancement.3} parent=1 // pred_check
      _
    $region19: #{spatial_detail_enhancement.3} parent=1 // pred_check_branch
      %38 = sbr.rel (0) target = $region21
    $region20: #{spatial_detail_enhancement.3} parent=1 // pred_region
      %39 = dma.done [#allocation5], 48
    $region21: #{spatial_detail_enhancement.3} parent=1 // pred_fallthru
      _
    %v41 = vld [vmem:[%s0] sm:$0xf]
    %v42 = vld [vmem:[%s0 + $0x4] sm:$0xf]
    %v43 = vld [vmem:[%s0 + $0x8] sm:$0xf]
    %v44 = vld [vmem:[%s0 + $0xc] sm:$0xf]
    %v45 = vld [vmem:[%s0 + $0x10] sm:$0xf]
    %v46 = vld [vmem:[%s0 + $0x14] sm:$0xf]
    %v47 = vld [vmem:[%s0 + $0x18] sm:$0xf]
    %v48 = vld [vmem:[%s0 + $0x1c] sm:$0xf]
    %v49 = vld [vmem:[#allocation2] sm:$0xff]
    %v50 = vld [vmem:[#allocation2 + $0x8] sm:$0xf]
    %v51 = vld [vmem:[#allocation2 + $0xc] sm:$0xff]
    %v52 = vld [vmem:[#allocation2 + $0x14] sm:$0xf]
    %v53 = vld [vmem:[#allocation2 + $0x18] sm:$0xff]
    %v54 = vld [vmem:[#allocation2 + $0x20] sm:$0xf]
    %v55 = vld [vmem:[#allocation2 + $0x24] sm:$0xff]
    %v56 = vld [vmem:[#allocation2 + $0x2c] sm:$0xf]
    %v57 = vld [vmem:[#allocation4] sm:$0x7]
    %v59 = vlaneseq
    %v60 = vshrl.u32 %v59, 7
    %v61 = vsub.s32 0, %v60
    %v62 = vrot.slane %v57, %v61
    %v63 = vlaneseq
    %v64 = vshrl.u32 %v63, 7
    %v65 = vsub.s32 1, %v64
    %v66 = vrot.slane %v57, %v65
    %v67 = vlaneseq
    %v68 = vshrl.u32 %v67, 7
    %v69 = vsub.s32 2, %v68
    %v70 = vrot.slane %v57, %v69
    %v82 = vunpack.c.l.b16 %v41
    %v83 = vunpack.c.l.b16 %v42
    %v84 = vunpack.c.l.b16 %v43
    %v85 = vunpack.c.l.b16 %v44
    %v86 = vunpack.c.l.b16 %v45
    %v87 = vunpack.c.l.b16 %v46
    %v88 = vunpack.c.l.b16 %v47
    %v89 = vunpack.c.l.b16 %v48
    %v90 = vpack.c.b16 %v83, %v82
    %v91 = vpack.c.b16 %v85, %v84
    %v92 = vpack.c.b16 %v87, %v86
    %v93 = vpack.c.b16 %v89, %v88
    %v102 = vunpack.c.l.b16 %v49
    %v103 = vunpack.c.h.b16 %v49
    %v104 = vunpack.c.l.b16 %v50
    %v105 = vunpack.c.l.b16 %v51
    %v106 = vunpack.c.h.b16 %v51
    %v107 = vunpack.c.l.b16 %v52
    %v108 = vunpack.c.l.b16 %v53
    %v109 = vunpack.c.h.b16 %v53
    %v110 = vunpack.c.l.b16 %v54
    %v111 = vunpack.c.l.b16 %v55
    %v112 = vunpack.c.h.b16 %v55
    %v113 = vunpack.c.l.b16 %v56
    %v114 = vpack.c.b16 %v105, %v102
    %v115 = vpack.c.b16 %v106, %v103
    %v116 = vpack.c.b16 %v107, %v104
    %v117 = vpack.c.b16 %v111, %v108
    %v118 = vpack.c.b16 %v112, %v109
    %v119 = vpack.c.b16 %v113, %v110
    %vm126 = vcmask 261120
    %v128 = vsel %vm126, %v90, 0
    %v131 = vsel %vm126, %v91, 0
    %v134 = vsel %vm126, %v92, 0
    %v137 = vsel %vm126, %v93, 0
    %139 = vmatprep.subr.bf16.mxu0 %v115
    %140 = vmatpush1.bf16.msra.mxu0 %v114
    %141 = vmatprep.subr.bf16.mxu0 %v118
    %142 = vmatpush1.bf16.msra.mxu0 %v117
    %143 = vmatprep.subr.bf16.mxu0 0
    %144 = vmatpush1.bf16.msra.mxu0 0
    %145 = vmatprep.subr.bf16.mxu0 0
    %146 = vmatpush1.bf16.msra.mxu0 0
    %147 = vmatprep.subr.bf16.mxu0 0
    %148 = vmatpush1.bf16.msra.mxu0 0
    %149 = vmatprep.subr.bf16.mxu0 0
    %150 = vmatpush1.bf16.msra.mxu0 0
    %151 = vmatprep.subr.bf16.mxu0 0
    %152 = vmatpush1.bf16.msra.mxu0 0
    %153 = vmatprep.subr.bf16.mxu0 0
    %154 = vmatpush1.bf16.msra.mxu0 0
    %155 = vmatprep.subr.bf16.mxu0 0
    %156 = vmatpush1.bf16.msra.mxu0 0
    %157 = vmatprep.subr.bf16.mxu0 0
    %158 = vmatpush1.bf16.msra.mxu0 0
    %159 = vmatprep.subr.bf16.mxu0 0
    %160 = vmatpush1.bf16.msra.mxu0 0
    %161 = vmatprep.subr.bf16.mxu0 0
    %162 = vmatpush1.bf16.msra.mxu0 0
    %163 = vmatprep.subr.bf16.mxu0 0
    %164 = vmatpush1.bf16.msra.mxu0 0
    %165 = vmatprep.subr.bf16.mxu0 0
    %166 = vmatpush1.bf16.msra.mxu0 0
    %167 = vmatprep.subr.bf16.mxu0 0
    %168 = vmatpush1.bf16.msra.mxu0 0
    %169 = vmatprep.subr.bf16.mxu0 0
    %170 = vmatpush1.bf16.msra.mxu0 0
    %171 = vmatprep.mubr.bf16.mxu0 0
    %172 = vmatmul.mubr.bf16.gmra.mrb[0].mxu0 %v128
    %v173 = vpop.f32.mrb[0].mxu0
    %v174 = vadd.f32 %v62, %v173
    %v175 = vpop.f32.mrb[0].mxu0
    %v176 = vadd.f32 %v66, %v175
    %v177 = vpop.f32.mrb[0].mxu0
    %v178 = vadd.f32 %v62, %v177
    %v179 = vpop.f32.mrb[0].mxu0
    %v180 = vadd.f32 %v66, %v179
    %181 = vmatprep.mubr.bf16.mxu0 0
    %182 = vmatmul.mubr.bf16.gmra.mrb[0].mxu0 %v131
    %v183 = vpop.f32.mrb[0].mxu0
    %v184 = vadd.f32 %v62, %v183
    %v185 = vpop.f32.mrb[0].mxu0
    %v186 = vadd.f32 %v66, %v185
    %v187 = vpop.f32.mrb[0].mxu0
    %v188 = vadd.f32 %v62, %v187
    %v189 = vpop.f32.mrb[0].mxu0
    %v190 = vadd.f32 %v66, %v189
    %191 = vmatprep.mubr.bf16.mxu0 0
    %192 = vmatmul.mubr.bf16.gmra.mrb[0].mxu0 %v134
    %v193 = vpop.f32.mrb[0].mxu0
    %v194 = vadd.f32 %v62, %v193
    %v195 = vpop.f32.mrb[0].mxu0
    %v196 = vadd.f32 %v66, %v195
    %v197 = vpop.f32.mrb[0].mxu0
    %v198 = vadd.f32 %v62, %v197
    %v199 = vpop.f32.mrb[0].mxu0
    %v200 = vadd.f32 %v66, %v199
    %201 = vmatprep.mubr.bf16.mxu0 0
    %202 = vmatmul.mubr.bf16.gmra.mrb[0].mxu0 %v137
    %v203 = vpop.f32.mrb[0].mxu0
    %v204 = vadd.f32 %v62, %v203
    %v205 = vpop.f32.mrb[0].mxu0
    %v206 = vadd.f32 %v66, %v205
    %v207 = vpop.f32.mrb[0].mxu0
    %v208 = vadd.f32 %v62, %v207
    %v209 = vpop.f32.mrb[0].mxu0
    %v210 = vadd.f32 %v66, %v209
    %211 = vdwg.mxu0
    %212 = vmatprep.subr.bf16.mxu0 0
    %213 = vmatpush1.bf16.msra.mxu0 %v116
    %214 = vmatprep.subr.bf16.mxu0 0
    %215 = vmatpush1.bf16.msra.mxu0 %v119
    %216 = vmatprep.subr.bf16.mxu0 0
    %217 = vmatpush1.bf16.msra.mxu0 0
    %218 = vmatprep.subr.bf16.mxu0 0
    %219 = vmatpush1.bf16.msra.mxu0 0
    %220 = vmatprep.subr.bf16.mxu0 0
    %221 = vmatpush1.bf16.msra.mxu0 0
    %222 = vmatprep.subr.bf16.mxu0 0
    %223 = vmatpush1.bf16.msra.mxu0 0
    %224 = vmatprep.subr.bf16.mxu0 0
    %225 = vmatpush1.bf16.msra.mxu0 0
    %226 = vmatprep.subr.bf16.mxu0 0
    %227 = vmatpush1.bf16.msra.mxu0 0
    %228 = vmatprep.subr.bf16.mxu0 0
    %229 = vmatpush1.bf16.msra.mxu0 0
    %230 = vmatprep.subr.bf16.mxu0 0
    %231 = vmatpush1.bf16.msra.mxu0 0
    %232 = vmatprep.subr.bf16.mxu0 0
    %233 = vmatpush1.bf16.msra.mxu0 0
    %234 = vmatprep.subr.bf16.mxu0 0
    %235 = vmatpush1.bf16.msra.mxu0 0
    %236 = vmatprep.subr.bf16.mxu0 0
    %237 = vmatpush1.bf16.msra.mxu0 0
    %238 = vmatprep.subr.bf16.mxu0 0
    %239 = vmatpush1.bf16.msra.mxu0 0
    %240 = vmatprep.subr.bf16.mxu0 0
    %241 = vmatpush1.bf16.msra.mxu0 0
    %242 = vmatprep.subr.bf16.mxu0 0
    %243 = vmatpush1.bf16.msra.mxu0 0
    %244 = vmatprep.mubr.bf16.mxu0 0
    %245 = vmatmul.mubr.bf16.gmra.mrb[0].mxu0 %v128
    %v246 = vpop.f32.mrb[0].mxu0
    %v247 = vadd.f32 %v70, %v246
    %v248 = vpop.f32.mrb[0].mxu0
    %v249 = vpop.f32.mrb[0].mxu0
    %v250 = vadd.f32 %v70, %v249
    %v251 = vpop.f32.mrb[0].mxu0
    %252 = vmatprep.mubr.bf16.mxu0 0
    %253 = vmatmul.mubr.bf16.gmra.mrb[0].mxu0 %v131
    %v254 = vpop.f32.mrb[0].mxu0
    %v255 = vadd.f32 %v70, %v254
    %v256 = vpop.f32.mrb[0].mxu0
    %v257 = vpop.f32.mrb[0].mxu0
    %v258 = vadd.f32 %v70, %v257
    %v259 = vpop.f32.mrb[0].mxu0
    %260 = vmatprep.mubr.bf16.mxu0 0
    %261 = vmatmul.mubr.bf16.gmra.mrb[0].mxu0 %v134
    %v262 = vpop.f32.mrb[0].mxu0
    %v263 = vadd.f32 %v70, %v262
    %v264 = vpop.f32.mrb[0].mxu0
    %v265 = vpop.f32.mrb[0].mxu0
    %v266 = vadd.f32 %v70, %v265
    %v267 = vpop.f32.mrb[0].mxu0
    %268 = vmatprep.mubr.bf16.mxu0 0
    %269 = vmatmul.mubr.bf16.gmra.mrb[0].mxu0 %v137
    %v270 = vpop.f32.mrb[0].mxu0
    %v271 = vadd.f32 %v70, %v270
    %v272 = vpop.f32.mrb[0].mxu0
    %v273 = vpop.f32.mrb[0].mxu0
    %v274 = vadd.f32 %v70, %v273
    %v275 = vpop.f32.mrb[0].mxu0
    %276 = vdwg.mxu0
    %277 = vst [vmem:[%s3] sm:$0xff] %v174
    %278 = vst [vmem:[%s3 + $0x8] sm:$0xff] %v176
    %279 = vst [vmem:[%s3 + $0x10] sm:$0xff] %v247
    %280 = vst [vmem:[%s3 + $0x18] sm:$0xff] %v178
    %281 = vst [vmem:[%s3 + $0x20] sm:$0xff] %v180
    %282 = vst [vmem:[%s3 + $0x28] sm:$0xff] %v250
    %283 = vst [vmem:[%s3 + $0x30] sm:$0xff] %v184
    %284 = vst [vmem:[%s3 + $0x38] sm:$0xff] %v186
    %285 = vst [vmem:[%s3 + $0x40] sm:$0xff] %v255
    %286 = vst [vmem:[%s3 + $0x48] sm:$0xff] %v188
    %287 = vst [vmem:[%s3 + $0x50] sm:$0xff] %v190
    %288 = vst [vmem:[%s3 + $0x58] sm:$0xff] %v258
    %289 = vst [vmem:[%s3 + $0x60] sm:$0xff] %v194
    %290 = vst [vmem:[%s3 + $0x68] sm:$0xff] %v196
    %291 = vst [vmem:[%s3 + $0x70] sm:$0xff] %v263
    %292 = vst [vmem:[%s3 + $0x78] sm:$0xff] %v198
    %293 = vst [vmem:[%s3 + $0x80] sm:$0xff] %v200
    %294 = vst [vmem:[%s3 + $0x88] sm:$0xff] %v266
    %295 = vst [vmem:[%s3 + $0x90] sm:$0xff] %v204
    %296 = vst [vmem:[%s3 + $0x98] sm:$0xff] %v206
    %297 = vst [vmem:[%s3 + $0xa0] sm:$0xff] %v271
    %298 = vst [vmem:[%s3 + $0xa8] sm:$0xff] %v208
    %299 = vst [vmem:[%s3 + $0xb0] sm:$0xff] %v210
    %300 = vst [vmem:[%s3 + $0xb8] sm:$0xff] %v274
    // Predicated region
    $region22: #{spatial_detail_enhancement.3} parent=1 // pred_check
      _
    $region23: #{spatial_detail_enhancement.3} parent=1 // pred_check_branch
      %302 = sbr.rel (0) target = $region25
    $region24: #{spatial_detail_enhancement.3} parent=1 // pred_region
      _
    $region25: #{spatial_detail_enhancement.3} parent=1 // pred_fallthru
      _
    // Predicated region
    $region26: #{spatial_detail_enhancement.3} parent=1 // pred_check
      _
    $region27: #{spatial_detail_enhancement.3} parent=1 // pred_check_branch
      %304 = sbr.rel (0) target = $region29
    $region28: #{spatial_detail_enhancement.3} parent=1 // pred_region
      _
    $region29: #{spatial_detail_enhancement.3} parent=1 // pred_fallthru
      _
    %305 = vsyncpa [#allocation3], 1
    %306 = vsyncpa [#allocation5], 1

// kernel: spatial_detail_enhancement.4
$region0: #{spatial_detail_enhancement.4}
  #allocation0 [shape = 'u32[]', space=smem, size = 0x4, offset = 0x4, fixed_abs, tag = 'smem constant byte address 0x4 - core index']
  #allocation1 [shape = 'u32[144,128]{1,0:T(1,128)}', space=vmem, size = 0x12000, scoped, tag = 'internal scratch']
  %s0 = inlined_call_operand.vmem [shape: bf16[576,384], index: 0, kind: input, shape index: {}]
  %s1 = inlined_call_operand.vmem [shape: bf16[384,128], index: 1, kind: input, shape index: {}]
  %s2 = inlined_call_operand.vmem [shape: f32[1,128], index: 2, kind: input, shape index: {}]
  %s3 = inlined_call_operand.vmem [shape: f32[576,128], index: 3, kind: output, shape index: {}]
  %s4 = sld [smem:[#allocation0]]
  $region45: #{spatial_detail_enhancement.4} parent=0
    _
  %s6 = ssub.s32 1, %s4
  %s7 = scalar_select 0, %s6, %s4
  loop: start=0, step=1, limit=4
  $region2: #{spatial_detail_enhancement.4} parent=0 // loop_pre_header
    _
  $region3: #{spatial_detail_enhancement.4} parent=0 // loop_header
    %s9 = sphi 0, %s13
    %p10 = scmp.ge.s32.totalorder %s9, 4
    %s19 = sphi 0, %s21
    %s22 = sphi 0, %s19
    %s23 = sphi 0, %s22
    %s39 = sphi 0, %s23
    %s43 = sphi 0, %s43
    %s45 = sphi 0, %s43
    %s46 = sphi 0, %s45
    %s60 = sphi 0, %s46
    %s64 = sphi 0, %s64
    %s66 = sphi 0, %s64
    %s67 = sphi 0, %s66
    %s81 = sphi 0, %s67
    %s87 = sphi 0, %s89
    %s90 = sphi 0, %s87
    %s91 = sphi 0, %s90
    %s107 = sphi 0, %s91
  $region4: #{spatial_detail_enhancement.4} parent=0 // loop_header_branch
    %12 = sbr.rel (%p10) target = $region8
  $region5: #{spatial_detail_enhancement.4} parent=0 // loop_body
    %s14 = ssub.s32 %s9, 1
    %s15 = ssub.s32 %s9, 2
    %s16 = sadd.s32 %s9, 1
    %s17 = ssub.s32 %s9, %s16
    %p18 = scmp.eq.s32.totalorder %s17, 0
    %s20 = sadd.s32 %s19, 1
    %s21 = scalar_select %p18, %s19, %s20
    %p24 = pneg %p18
    %p25 = scmp.eq.s32.totalorder %s9, 1
    %p26 = por %p24, %p25
    %p27 = scmp.ne.s32.totalorder %s19, %s22
    %p28 = scmp.eq.s32.totalorder %s9, 0
    %p29 = por %p27, %p28
    %p30 = scmp.ne.s32.totalorder %s19, %s22
    %p31 = scmp.eq.s32.totalorder %s14, 1
    %p32 = por %p30, %p31
    %p33 = scmp.ne.s32.totalorder %s22, %s23
    %p34 = scmp.eq.s32.totalorder %s14, 0
    %p35 = por %p33, %p34
    %p36 = scmp.ne.s32.totalorder %s22, %s23
    %p37 = scmp.eq.s32.totalorder %s15, 1
    %p38 = por %p36, %p37
    %p40 = scmp.ne.s32.totalorder %s23, %s39
    %p41 = scmp.eq.s32.totalorder %s15, 0
    %p42 = por %p40, %p41
    %s44 = sadd.s32 %s43, 1
    %p47 = scmp.eq.s32.totalorder %s9, 1
    %p48 = scmp.ne.s32.totalorder %s43, %s45
    %p49 = scmp.eq.s32.totalorder %s9, 0
    %p50 = por %p48, %p49
    %p51 = scmp.ne.s32.totalorder %s43, %s45
    %p52 = scmp.eq.s32.totalorder %s14, 1
    %p53 = por %p51, %p52
    %p54 = scmp.ne.s32.totalorder %s45, %s46
    %p55 = scmp.eq.s32.totalorder %s14, 0
    %p56 = por %p54, %p55
    %p57 = scmp.ne.s32.totalorder %s45, %s46
    %p58 = scmp.eq.s32.totalorder %s15, 1
    %p59 = por %p57, %p58
    %p61 = scmp.ne.s32.totalorder %s46, %s60
    %p62 = scmp.eq.s32.totalorder %s15, 0
    %p63 = por %p61, %p62
    %s65 = sadd.s32 %s64, 1
    %p68 = scmp.eq.s32.totalorder %s9, 1
    %p69 = scmp.ne.s32.totalorder %s64, %s66
    %p70 = scmp.eq.s32.totalorder %s9, 0
    %p71 = por %p69, %p70
    %p72 = scmp.ne.s32.totalorder %s64, %s66
    %p73 = scmp.eq.s32.totalorder %s14, 1
    %p74 = por %p72, %p73
    %p75 = scmp.ne.s32.totalorder %s66, %s67
    %p76 = scmp.eq.s32.totalorder %s14, 0
    %p77 = por %p75, %p76
    %p78 = scmp.ne.s32.totalorder %s66, %s67
    %p79 = scmp.eq.s32.totalorder %s15, 1
    %p80 = por %p78, %p79
    %p82 = scmp.ne.s32.totalorder %s67, %s81
    %p83 = scmp.eq.s32.totalorder %s15, 0
    %p84 = por %p82, %p83
    %s85 = ssub.s32 %s9, %s16
    %p86 = scmp.eq.s32.totalorder %s85, 0
    %s88 = sadd.s32 %s87, 1
    %s89 = scalar_select %p86, %s87, %s88
    %p92 = pneg %p86
    %p93 = scmp.eq.s32.totalorder %s9, 1
    %p94 = por %p92, %p93
    %p95 = scmp.ne.s32.totalorder %s87, %s90
    %p96 = scmp.eq.s32.totalorder %s9, 0
    %p97 = por %p95, %p96
    %p98 = scmp.ne.s32.totalorder %s87, %s90
    %p99 = scmp.eq.s32.totalorder %s14, 1
    %p100 = por %p98, %p99
    %p101 = scmp.ne.s32.totalorder %s90, %s91
    %p102 = scmp.eq.s32.totalorder %s14, 0
    %p103 = por %p101, %p102
    %p104 = scmp.ne.s32.totalorder %s90, %s91
    %p105 = scmp.eq.s32.totalorder %s15, 1
    %p106 = por %p104, %p105
    %p108 = scmp.ne.s32.totalorder %s91, %s107
    %p109 = scmp.eq.s32.totalorder %s15, 0
    %p110 = por %p108, %p109
    %p111 = scmp.le.s32.totalorder 1, %s9
    %p112 = scmp.lt.s32.totalorder %s9, 3
    %p113 = pnand %p111, %p112
    %p114 = pneg %p113
    // Predicated region
    $region9: #{spatial_detail_enhancement.4} parent=5 // pred_check
      _
    $region10: #{spatial_detail_enhancement.4} parent=5 // pred_check_branch
      %116 = sbr.rel (%p113) target = $region12
    $region11: #{spatial_detail_enhancement.4} parent=5 // pred_region
      %s117 = ssub.s32 %s9, 1
      // Predicated region
      $region13: #{spatial_detail_enhancement.4} parent=11 // pred_check
        %p118 = pneg %p56
      $region14: #{spatial_detail_enhancement.4} parent=11 // pred_check_branch
        %120 = sbr.rel (%p118) target = $region16
      $region15: #{spatial_detail_enhancement.4} parent=11 // pred_region
        _
      $region16: #{spatial_detail_enhancement.4} parent=11 // pred_fallthru
        _
      // Predicated region
      $region17: #{spatial_detail_enhancement.4} parent=11 // pred_check
        %p121 = pneg %p77
      $region18: #{spatial_detail_enhancement.4} parent=11 // pred_check_branch
        %123 = sbr.rel (%p121) target = $region20
      $region19: #{spatial_detail_enhancement.4} parent=11 // pred_region
        _
      $region20: #{spatial_detail_enhancement.4} parent=11 // pred_fallthru
        _
    $region12: #{spatial_detail_enhancement.4} parent=5 // pred_fallthru
      _
    %p124 = scmp.lt.s32.totalorder %s9, 2
    // Predicated region
    $region21: #{spatial_detail_enhancement.4} parent=5 // pred_check
      %p125 = pneg %p124
    $region22: #{spatial_detail_enhancement.4} parent=5 // pred_check_branch
      %127 = sbr.rel (%p125) target = $region24
    $region23: #{spatial_detail_enhancement.4} parent=5 // pred_region
      // Predicated region
      $region25: #{spatial_detail_enhancement.4} parent=23 // pred_check
        %p128 = pneg %p29
      $region26: #{spatial_detail_enhancement.4} parent=23 // pred_check_branch
        %130 = sbr.rel (%p128) target = $region28
      $region27: #{spatial_detail_enhancement.4} parent=23 // pred_region
        %s131 = smul.u32 36, %s9
        %p132 = scmp.lt.s32.totalorder %s131, 71
        %s133 = scalar_select %p132, %s131, 71
        %s134 = smul.addr %s133, 3
        %s135 = smul.addr %s134, 4
        %s136 = scalar_lea.vmem %s0, %s135
        %s137 = smul.u32 36, %s9
      $region28: #{spatial_detail_enhancement.4} parent=23 // pred_fallthru
        _
    $region24: #{spatial_detail_enhancement.4} parent=5 // pred_fallthru
      _
    %p138 = scmp.le.s32.totalorder 1, %s9
    %p139 = scmp.lt.s32.totalorder %s9, 3
    %p140 = pnand %p138, %p139
    %p141 = pneg %p140
    // Predicated region
    $region29: #{spatial_detail_enhancement.4} parent=5 // pred_check
      _
    $region30: #{spatial_detail_enhancement.4} parent=5 // pred_check_branch
      %143 = sbr.rel (%p140) target = $region32
    $region31: #{spatial_detail_enhancement.4} parent=5 // pred_region
      %s144 = ssub.s32 %s9, 1
      %s145 = smul.u32 36, %s14
      %p146 = scmp.lt.s32.totalorder %s145, 71
      %s147 = scalar_select %p146, %s145, 71
      %s148 = smul.addr %s147, 3
      %s149 = smul.addr %s148, 4
      %s150 = scalar_lea.vmem %s0, %s149
      %p151 = pneg %p35
      %p152 = pneg %p32
      %p153 = pneg %p56
      %p154 = pneg %p53
      %p155 = pneg %p77
      %p156 = pneg %p74
      %p157 = pneg %p103
      %p158 = pneg %p100
      %s159 = smul.u32 36, %s14
      %p160 = scmp.lt.s32.totalorder %s159, 71
      %s161 = scalar_select %p160, %s159, 71
      %s162 = smul.addr %s161, 8
      %s163 = scalar_lea.vmem %s3, %s162
      %s164 = smul.u32 36, %s14
      %p165 = scmp.lt.s32.totalorder %s164, 71
      %s166 = scalar_select %p165, %s164, 71
      %s167 = smul.addr %s166, 3
      %s168 = smul.addr %s167, 4
      %s169 = scalar_lea.vmem %s0, %s168
      %s170 = smul.u32 36, %s14
      %s171 = smul.u32 36, %s14
      %p172 = scmp.lt.s32.totalorder %s171, 71
      %s173 = scalar_select %p172, %s171, 71
      %s174 = smul.addr %s173, 8
      %s175 = scalar_lea.vmem %s3, %s174
      %s176 = smul.u32 36, %s14
      %v178 = vld [vmem:[%s169] sm:$0xff]
      %v179 = vld [vmem:[%s169 + $0x8] sm:$0xf]
      %v180 = vld [vmem:[%s169 + $0xc] sm:$0xff]
      %v181 = vld [vmem:[%s169 + $0x14] sm:$0xf]
      %v182 = vld [vmem:[%s169 + $0x18] sm:$0xff]
      %v183 = vld [vmem:[%s169 + $0x20] sm:$0xf]
      %v184 = vld [vmem:[%s169 + $0x24] sm:$0xff]
      %v185 = vld [vmem:[%s169 + $0x2c] sm:$0xf]
      %v186 = vld [vmem:[%s169 + $0x30] sm:$0xff]
      %v187 = vld [vmem:[%s169 + $0x38] sm:$0xf]
      %v188 = vld [vmem:[%s169 + $0x3c] sm:$0xff]
      %v189 = vld [vmem:[%s169 + $0x44] sm:$0xf]
      %v190 = vld [vmem:[%s169 + $0x48] sm:$0xff]
      %v191 = vld [vmem:[%s169 + $0x50] sm:$0xf]
      %v192 = vld [vmem:[%s169 + $0x54] sm:$0xff]
      %v193 = vld [vmem:[%s169 + $0x5c] sm:$0xf]
      %v194 = vld [vmem:[%s169 + $0x60] sm:$0xff]
      %v195 = vld [vmem:[%s169 + $0x68] sm:$0xf]
      %v196 = vld [vmem:[%s169 + $0x6c] sm:$0xff]
      %v197 = vld [vmem:[%s169 + $0x74] sm:$0xf]
      %v198 = vld [vmem:[%s169 + $0x78] sm:$0xff]
      %v199 = vld [vmem:[%s169 + $0x80] sm:$0xf]
      %v200 = vld [vmem:[%s169 + $0x84] sm:$0xff]
      %v201 = vld [vmem:[%s169 + $0x8c] sm:$0xf]
      %v202 = vld [vmem:[%s169 + $0x90] sm:$0xff]
      %v203 = vld [vmem:[%s169 + $0x98] sm:$0xf]
      %v204 = vld [vmem:[%s169 + $0x9c] sm:$0xff]
      %v205 = vld [vmem:[%s169 + $0xa4] sm:$0xf]
      %v206 = vld [vmem:[%s169 + $0xa8] sm:$0xff]
      %v207 = vld [vmem:[%s169 + $0xb0] sm:$0xf]
      %v208 = vld [vmem:[%s169 + $0xb4] sm:$0xff]
      %v209 = vld [vmem:[%s169 + $0xbc] sm:$0xf]
      %v210 = vld [vmem:[%s169 + $0xc0] sm:$0xff]
      %v211 = vld [vmem:[%s169 + $0xc8] sm:$0xf]
      %v212 = vld [vmem:[%s169 + $0xcc] sm:$0xff]
      %v213 = vld [vmem:[%s169 + $0xd4] sm:$0xf]
      %v214 = vld [vmem:[%s169 + $0xd8] sm:$0xff]
      %v215 = vld [vmem:[%s169 + $0xe0] sm:$0xf]
      %v216 = vld [vmem:[%s169 + $0xe4] sm:$0xff]
      %v217 = vld [vmem:[%s169 + $0xec] sm:$0xf]
      %v218 = vld [vmem:[%s169 + $0xf0] sm:$0xff]
      %v219 = vld [vmem:[%s169 + $0xf8] sm:$0xf]
      %v220 = vld [vmem:[%s169 + $0xfc] sm:$0xff]
      %v221 = vld [vmem:[%s169 + $0x104] sm:$0xf]
      %v222 = vld [vmem:[%s169 + $0x108] sm:$0xff]
      %v223 = vld [vmem:[%s169 + $0x110] sm:$0xf]
      %v224 = vld [vmem:[%s169 + $0x114] sm:$0xff]
      %v225 = vld [vmem:[%s169 + $0x11c] sm:$0xf]
      %v226 = vld [vmem:[%s169 + $0x120] sm:$0xff]
      %v227 = vld [vmem:[%s169 + $0x128] sm:$0xf]
      %v228 = vld [vmem:[%s169 + $0x12c] sm:$0xff]
      %v229 = vld [vmem:[%s169 + $0x134] sm:$0xf]
      %v230 = vld [vmem:[%s169 + $0x138] sm:$0xff]
      %v231 = vld [vmem:[%s169 + $0x140] sm:$0xf]
      %v232 = vld [vmem:[%s169 + $0x144] sm:$0xff]
      %v233 = vld [vmem:[%s169 + $0x14c] sm:$0xf]
      %v234 = vld [vmem:[%s169 + $0x150] sm:$0xff]
      %v235 = vld [vmem:[%s169 + $0x158] sm:$0xf]
      %v236 = vld [vmem:[%s169 + $0x15c] sm:$0xff]
      %v237 = vld [vmem:[%s169 + $0x164] sm:$0xf]
      %v238 = vld [vmem:[%s169 + $0x168] sm:$0xff]
      %v239 = vld [vmem:[%s169 + $0x170] sm:$0xf]
      %v240 = vld [vmem:[%s169 + $0x174] sm:$0xff]
      %v241 = vld [vmem:[%s169 + $0x17c] sm:$0xf]
      %v242 = vld [vmem:[%s169 + $0x180] sm:$0xff]
      %v243 = vld [vmem:[%s169 + $0x188] sm:$0xf]
      %v244 = vld [vmem:[%s169 + $0x18c] sm:$0xff]
      %v245 = vld [vmem:[%s169 + $0x194] sm:$0xf]
      %v246 = vld [vmem:[%s169 + $0x198] sm:$0xff]
      %v247 = vld [vmem:[%s169 + $0x1a0] sm:$0xf]
      %v248 = vld [vmem:[%s169 + $0x1a4] sm:$0xff]
      %v249 = vld [vmem:[%s169 + $0x1ac] sm:$0xf]
      %v250 = vld [vmem:[%s1] sm:$0xf]
      %v251 = vld [vmem:[%s1 + $0x4] sm:$0xf]
      %v252 = vld [vmem:[%s1 + $0x8] sm:$0xf]
      %v253 = vld [vmem:[%s1 + $0xc] sm:$0xf]
      %v254 = vld [vmem:[%s1 + $0x10] sm:$0xf]
      %v255 = vld [vmem:[%s1 + $0x14] sm:$0xf]
      %v256 = vld [vmem:[%s1 + $0x18] sm:$0xf]
      %v257 = vld [vmem:[%s1 + $0x1c] sm:$0xf]
      %v258 = vld [vmem:[%s1 + $0x20] sm:$0xf]
      %v259 = vld [vmem:[%s1 + $0x24] sm:$0xf]
      %v260 = vld [vmem:[%s1 + $0x28] sm:$0xf]
      %v261 = vld [vmem:[%s1 + $0x2c] sm:$0xf]
      %v262 = vld [vmem:[%s1 + $0x30] sm:$0xf]
      %v263 = vld [vmem:[%s1 + $0x34] sm:$0xf]
      %v264 = vld [vmem:[%s1 + $0x38] sm:$0xf]
      %v265 = vld [vmem:[%s1 + $0x3c] sm:$0xf]
      %v266 = vld [vmem:[%s1 + $0x40] sm:$0xf]
      %v267 = vld [vmem:[%s1 + $0x44] sm:$0xf]
      %v268 = vld [vmem:[%s1 + $0x48] sm:$0xf]
      %v269 = vld [vmem:[%s1 + $0x4c] sm:$0xf]
      %v270 = vld [vmem:[%s1 + $0x50] sm:$0xf]
      %v271 = vld [vmem:[%s1 + $0x54] sm:$0xf]
      %v272 = vld [vmem:[%s1 + $0x58] sm:$0xf]
      %v273 = vld [vmem:[%s1 + $0x5c] sm:$0xf]
      %v274 = vld [vmem:[%s1 + $0x60] sm:$0xf]
      %v275 = vld [vmem:[%s1 + $0x64] sm:$0xf]
      %v276 = vld [vmem:[%s1 + $0x68] sm:$0xf]
      %v277 = vld [vmem:[%s1 + $0x6c] sm:$0xf]
      %v278 = vld [vmem:[%s1 + $0x70] sm:$0xf]
      %v279 = vld [vmem:[%s1 + $0x74] sm:$0xf]
      %v280 = vld [vmem:[%s1 + $0x78] sm:$0xf]
      %v281 = vld [vmem:[%s1 + $0x7c] sm:$0xf]
      %v282 = vld [vmem:[%s1 + $0x80] sm:$0xf]
      %v283 = vld [vmem:[%s1 + $0x84] sm:$0xf]
      %v284 = vld [vmem:[%s1 + $0x88] sm:$0xf]
      %v285 = vld [vmem:[%s1 + $0x8c] sm:$0xf]
      %v286 = vld [vmem:[%s1 + $0x90] sm:$0xf]
      %v287 = vld [vmem:[%s1 + $0x94] sm:$0xf]
      %v288 = vld [vmem:[%s1 + $0x98] sm:$0xf]
      %v289 = vld [vmem:[%s1 + $0x9c] sm:$0xf]
      %v290 = vld [vmem:[%s1 + $0xa0] sm:$0xf]
      %v291 = vld [vmem:[%s1 + $0xa4] sm:$0xf]
      %v292 = vld [vmem:[%s1 + $0xa8] sm:$0xf]
      %v293 = vld [vmem:[%s1 + $0xac] sm:$0xf]
      %v294 = vld [vmem:[%s1 + $0xb0] sm:$0xf]
      %v295 = vld [vmem:[%s1 + $0xb4] sm:$0xf]
      %v296 = vld [vmem:[%s1 + $0xb8] sm:$0xf]
      %v297 = vld [vmem:[%s1 + $0xbc] sm:$0xf]
      %v298 = vld [vmem:[%s2] sm:$0x1]
      %v300 = vlaneseq
      %v301 = vshrl.u32 %v300, 7
      %v302 = vsub.s32 0, %v301
      %v303 = vrot.slane %v298, %v302
      %v377 = vunpack.c.l.b16 %v178
      %v378 = vunpack.c.h.b16 %v178
      %v379 = vunpack.c.l.b16 %v179
      %v380 = vunpack.c.l.b16 %v180
      %v381 = vunpack.c.h.b16 %v180
      %v382 = vunpack.c.l.b16 %v181
      %v383 = vunpack.c.l.b16 %v182
      %v384 = vunpack.c.h.b16 %v182
      %v385 = vunpack.c.l.b16 %v183
      %v386 = vunpack.c.l.b16 %v184
      %v387 = vunpack.c.h.b16 %v184
      %v388 = vunpack.c.l.b16 %v185
      %v389 = vunpack.c.l.b16 %v186
      %v390 = vunpack.c.h.b16 %v186
      %v391 = vunpack.c.l.b16 %v187
      %v392 = vunpack.c.l.b16 %v188
      %v393 = vunpack.c.h.b16 %v188
      %v394 = vunpack.c.l.b16 %v189
      %v395 = vunpack.c.l.b16 %v190
      %v396 = vunpack.c.h.b16 %v190
      %v397 = vunpack.c.l.b16 %v191
      %v398 = vunpack.c.l.b16 %v192
      %v399 = vunpack.c.h.b16 %v192
      %v400 = vunpack.c.l.b16 %v193
      %v401 = vunpack.c.l.b16 %v194
      %v402 = vunpack.c.h.b16 %v194
      %v403 = vunpack.c.l.b16 %v195
      %v404 = vunpack.c.l.b16 %v196
      %v405 = vunpack.c.h.b16 %v196
      %v406 = vunpack.c.l.b16 %v197
      %v407 = vunpack.c.l.b16 %v198
      %v408 = vunpack.c.h.b16 %v198
      %v409 = vunpack.c.l.b16 %v199
      %v410 = vunpack.c.l.b16 %v200
      %v411 = vunpack.c.h.b16 %v200
      %v412 = vunpack.c.l.b16 %v201
      %v413 = vunpack.c.l.b16 %v202
      %v414 = vunpack.c.h.b16 %v202
      %v415 = vunpack.c.l.b16 %v203
      %v416 = vunpack.c.l.b16 %v204
      %v417 = vunpack.c.h.b16 %v204
      %v418 = vunpack.c.l.b16 %v205
      %v419 = vunpack.c.l.b16 %v206
      %v420 = vunpack.c.h.b16 %v206
      %v421 = vunpack.c.l.b16 %v207
      %v422 = vunpack.c.l.b16 %v208
      %v423 = vunpack.c.h.b16 %v208
      %v424 = vunpack.c.l.b16 %v209
      %v425 = vunpack.c.l.b16 %v210
      %v426 = vunpack.c.h.b16 %v210
      %v427 = vunpack.c.l.b16 %v211
      %v428 = vunpack.c.l.b16 %v212
      %v429 = vunpack.c.h.b16 %v212
      %v430 = vunpack.c.l.b16 %v213
      %v431 = vunpack.c.l.b16 %v214
      %v432 = vunpack.c.h.b16 %v214
      %v433 = vunpack.c.l.b16 %v215
      %v434 = vunpack.c.l.b16 %v216
      %v435 = vunpack.c.h.b16 %v216
      %v436 = vunpack.c.l.b16 %v217
      %v437 = vunpack.c.l.b16 %v218
      %v438 = vunpack.c.h.b16 %v218
      %v439 = vunpack.c.l.b16 %v219
      %v440 = vunpack.c.l.b16 %v220
      %v441 = vunpack.c.h.b16 %v220
      %v442 = vunpack.c.l.b16 %v221
      %v443 = vunpack.c.l.b16 %v222
      %v444 = vunpack.c.h.b16 %v222
      %v445 = vunpack.c.l.b16 %v223
      %v446 = vunpack.c.l.b16 %v224
      %v447 = vunpack.c.h.b16 %v224
      %v448 = vunpack.c.l.b16 %v225
      %v449 = vunpack.c.l.b16 %v226
      %v450 = vunpack.c.h.b16 %v226
      %v451 = vunpack.c.l.b16 %v227
      %v452 = vunpack.c.l.b16 %v228
      %v453 = vunpack.c.h.b16 %v228
      %v454 = vunpack.c.l.b16 %v229
      %v455 = vunpack.c.l.b16 %v230
      %v456 = vunpack.c.h.b16 %v230
      %v457 = vunpack.c.l.b16 %v231
      %v458 = vunpack.c.l.b16 %v232
      %v459 = vunpack.c.h.b16 %v232
      %v460 = vunpack.c.l.b16 %v233
      %v461 = vunpack.c.l.b16 %v234
      %v462 = vunpack.c.h.b16 %v234
      %v463 = vunpack.c.l.b16 %v235
      %v464 = vunpack.c.l.b16 %v236
      %v465 = vunpack.c.h.b16 %v236
      %v466 = vunpack.c.l.b16 %v237
      %v467 = vunpack.c.l.b16 %v238
      %v468 = vunpack.c.h.b16 %v238
      %v469 = vunpack.c.l.b16 %v239
      %v470 = vunpack.c.l.b16 %v240
      %v471 = vunpack.c.h.b16 %v240
      %v472 = vunpack.c.l.b16 %v241
      %v473 = vunpack.c.l.b16 %v242
      %v474 = vunpack.c.h.b16 %v242
      %v475 = vunpack.c.l.b16 %v243
      %v476 = vunpack.c.l.b16 %v244
      %v477 = vunpack.c.h.b16 %v244
      %v478 = vunpack.c.l.b16 %v245
      %v479 = vunpack.c.l.b16 %v246
      %v480 = vunpack.c.h.b16 %v246
      %v481 = vunpack.c.l.b16 %v247
      %v482 = vunpack.c.l.b16 %v248
      %v483 = vunpack.c.h.b16 %v248
      %v484 = vunpack.c.l.b16 %v249
      %v485 = vpack.c.b16 %v380, %v377
      %v486 = vpack.c.b16 %v381, %v378
      %v487 = vpack.c.b16 %v382, %v379
      %v488 = vpack.c.b16 %v386, %v383
      %v489 = vpack.c.b16 %v387, %v384
      %v490 = vpack.c.b16 %v388, %v385
      %v491 = vpack.c.b16 %v392, %v389
      %v492 = vpack.c.b16 %v393, %v390
      %v493 = vpack.c.b16 %v394, %v391
      %v494 = vpack.c.b16 %v398, %v395
      %v495 = vpack.c.b16 %v399, %v396
      %v496 = vpack.c.b16 %v400, %v397
      %v497 = vpack.c.b16 %v404, %v401
      %v498 = vpack.c.b16 %v405, %v402
      %v499 = vpack.c.b16 %v406, %v403
      %v500 = vpack.c.b16 %v410, %v407
      %v501 = vpack.c.b16 %v411, %v408
      %v502 = vpack.c.b16 %v412, %v409
      %v503 = vpack.c.b16 %v416, %v413
      %v504 = vpack.c.b16 %v417, %v414
      %v505 = vpack.c.b16 %v418, %v415
      %v506 = vpack.c.b16 %v422, %v419
      %v507 = vpack.c.b16 %v423, %v420
      %v508 = vpack.c.b16 %v424, %v421
      %v509 = vpack.c.b16 %v428, %v425
      %v510 = vpack.c.b16 %v429, %v426
      %v511 = vpack.c.b16 %v430, %v427
      %v512 = vpack.c.b16 %v434, %v431
      %v513 = vpack.c.b16 %v435, %v432
      %v514 = vpack.c.b16 %v436, %v433
      %v515 = vpack.c.b16 %v440, %v437
      %v516 = vpack.c.b16 %v441, %v438
      %v517 = vpack.c.b16 %v442, %v439
      %v518 = vpack.c.b16 %v446, %v443
      %v519 = vpack.c.b16 %v447, %v444
      %v520 = vpack.c.b16 %v448, %v445
      %v521 = vpack.c.b16 %v452, %v449
      %v522 = vpack.c.b16 %v453, %v450
      %v523 = vpack.c.b16 %v454, %v451
      %v524 = vpack.c.b16 %v458, %v455
      %v525 = vpack.c.b16 %v459, %v456
      %v526 = vpack.c.b16 %v460, %v457
      %v527 = vpack.c.b16 %v464, %v461
      %v528 = vpack.c.b16 %v465, %v462
      %v529 = vpack.c.b16 %v466, %v463
      %v530 = vpack.c.b16 %v470, %v467
      %v531 = vpack.c.b16 %v471, %v468
      %v532 = vpack.c.b16 %v472, %v469
      %v533 = vpack.c.b16 %v476, %v473
      %v534 = vpack.c.b16 %v477, %v474
      %v535 = vpack.c.b16 %v478, %v475
      %v536 = vpack.c.b16 %v482, %v479
      %v537 = vpack.c.b16 %v483, %v480
      %v538 = vpack.c.b16 %v484, %v481
      %v641 = vunpack.c.l.b16 %v250
      %v642 = vunpack.c.l.b16 %v251
      %v643 = vunpack.c.l.b16 %v252
      %v644 = vunpack.c.l.b16 %v253
      %v645 = vunpack.c.l.b16 %v254
      %v646 = vunpack.c.l.b16 %v255
      %v647 = vunpack.c.l.b16 %v256
      %v648 = vunpack.c.l.b16 %v257
      %v649 = vunpack.c.l.b16 %v258
      %v650 = vunpack.c.l.b16 %v259
      %v651 = vunpack.c.l.b16 %v260
      %v652 = vunpack.c.l.b16 %v261
      %v653 = vunpack.c.l.b16 %v262
      %v654 = vunpack.c.l.b16 %v263
      %v655 = vunpack.c.l.b16 %v264
      %v656 = vunpack.c.l.b16 %v265
      %v657 = vunpack.c.l.b16 %v266
      %v658 = vunpack.c.l.b16 %v267
      %v659 = vunpack.c.l.b16 %v268
      %v660 = vunpack.c.l.b16 %v269
      %v661 = vunpack.c.l.b16 %v270
      %v662 = vunpack.c.l.b16 %v271
      %v663 = vunpack.c.l.b16 %v272
      %v664 = vunpack.c.l.b16 %v273
      %v665 = vunpack.c.l.b16 %v274
      %v666 = vunpack.c.l.b16 %v275
      %v667 = vunpack.c.l.b16 %v276
      %v668 = vunpack.c.l.b16 %v277
      %v669 = vunpack.c.l.b16 %v278
      %v670 = vunpack.c.l.b16 %v279
      %v671 = vunpack.c.l.b16 %v280
      %v672 = vunpack.c.l.b16 %v281
      %v673 = vunpack.c.l.b16 %v282
      %v674 = vunpack.c.l.b16 %v283
      %v675 = vunpack.c.l.b16 %v284
      %v676 = vunpack.c.l.b16 %v285
      %v677 = vunpack.c.l.b16 %v286
      %v678 = vunpack.c.l.b16 %v287
      %v679 = vunpack.c.l.b16 %v288
      %v680 = vunpack.c.l.b16 %v289
      %v681 = vunpack.c.l.b16 %v290
      %v682 = vunpack.c.l.b16 %v291
      %v683 = vunpack.c.l.b16 %v292
      %v684 = vunpack.c.l.b16 %v293
      %v685 = vunpack.c.l.b16 %v294
      %v686 = vunpack.c.l.b16 %v295
      %v687 = vunpack.c.l.b16 %v296
      %v688 = vunpack.c.l.b16 %v297
      %v689 = vpack.c.b16 %v642, %v641
      %v690 = vpack.c.b16 %v644, %v643
      %v691 = vpack.c.b16 %v646, %v645
      %v692 = vpack.c.b16 %v648, %v647
      %v693 = vpack.c.b16 %v650, %v649
      %v694 = vpack.c.b16 %v652, %v651
      %v695 = vpack.c.b16 %v654, %v653
      %v696 = vpack.c.b16 %v656, %v655
      %v697 = vpack.c.b16 %v658, %v657
      %v698 = vpack.c.b16 %v660, %v659
      %v699 = vpack.c.b16 %v662, %v661
      %v700 = vpack.c.b16 %v664, %v663
      %v701 = vpack.c.b16 %v666, %v665
      %v702 = vpack.c.b16 %v668, %v667
      %v703 = vpack.c.b16 %v670, %v669
      %v704 = vpack.c.b16 %v672, %v671
      %v705 = vpack.c.b16 %v674, %v673
      %v706 = vpack.c.b16 %v676, %v675
      %v707 = vpack.c.b16 %v678, %v677
      %v708 = vpack.c.b16 %v680, %v679
      %v709 = vpack.c.b16 %v682, %v681
      %v710 = vpack.c.b16 %v684, %v683
      %v711 = vpack.c.b16 %v686, %v685
      %v712 = vpack.c.b16 %v688, %v687
      %737 = vmatprep.subr.bf16.mxu0 0
      %738 = vmatpush1.bf16.msra.mxu0 %v689
      %739 = vmatprep.subr.bf16.mxu0 0
      %740 = vmatpush1.bf16.msra.mxu0 %v690
      %741 = vmatprep.subr.bf16.mxu0 0
      %742 = vmatpush1.bf16.msra.mxu0 %v691
      %743 = vmatprep.subr.bf16.mxu0 0
      %744 = vmatpush1.bf16.msra.mxu0 %v692
      %745 = vmatprep.subr.bf16.mxu0 0
      %746 = vmatpush1.bf16.msra.mxu0 %v693
      %747 = vmatprep.subr.bf16.mxu0 0
      %748 = vmatpush1.bf16.msra.mxu0 %v694
      %749 = vmatprep.subr.bf16.mxu0 0
      %750 = vmatpush1.bf16.msra.mxu0 %v695
      %751 = vmatprep.subr.bf16.mxu0 0
      %752 = vmatpush1.bf16.msra.mxu0 %v696
      %753 = vmatprep.subr.bf16.mxu0 0
      %754 = vmatpush1.bf16.msra.mxu0 %v697
      %755 = vmatprep.subr.bf16.mxu0 0
      %756 = vmatpush1.bf16.msra.mxu0 %v698
      %757 = vmatprep.subr.bf16.mxu0 0
      %758 = vmatpush1.bf16.msra.mxu0 %v699
      %759 = vmatprep.subr.bf16.mxu0 0
      %760 = vmatpush1.bf16.msra.mxu0 %v700
      %761 = vmatprep.subr.bf16.mxu0 0
      %762 = vmatpush1.bf16.msra.mxu0 %v701
      %763 = vmatprep.subr.bf16.mxu0 0
      %764 = vmatpush1.bf16.msra.mxu0 %v702
      %765 = vmatprep.subr.bf16.mxu0 0
      %766 = vmatpush1.bf16.msra.mxu0 %v703
      %767 = vmatprep.subr.bf16.mxu0 0
      %768 = vmatpush1.bf16.msra.mxu0 %v704
      %769 = vmatprep.mubr.bf16.mxu0 %v486
      %770 = vmatmul.mubr.bf16.gmra.mrb[0].mxu0 %v485
      %v771 = vpop.f32.mrb[0].mxu0
      %v772 = vadd.f32 %v303, %v771
      %v773 = vpop.f32.mrb[0].mxu0
      %v774 = vpop.f32.mrb[0].mxu0
      %v775 = vadd.f32 %v303, %v774
      %v776 = vpop.f32.mrb[0].mxu0
      %777 = vmatprep.mubr.bf16.mxu0 %v489
      %778 = vmatmul.mubr.bf16.gmra.mrb[0].mxu0 %v488
      %v779 = vpop.f32.mrb[0].mxu0
      %v780 = vadd.f32 %v303, %v779
      %v781 = vpop.f32.mrb[0].mxu0
      %v782 = vpop.f32.mrb[0].mxu0
      %v783 = vadd.f32 %v303, %v782
      %v784 = vpop.f32.mrb[0].mxu0
      %785 = vmatprep.mubr.bf16.mxu0 %v492
      %786 = vmatmul.mubr.bf16.gmra.mrb[0].mxu0 %v491
      %v787 = vpop.f32.mrb[0].mxu0
      %v788 = vadd.f32 %v303, %v787
      %v789 = vpop.f32.mrb[0].mxu0
      %v790 = vpop.f32.mrb[0].mxu0
      %v791 = vadd.f32 %v303, %v790
      %v792 = vpop.f32.mrb[0].mxu0
      %793 = vmatprep.mubr.bf16.mxu0 %v495
      %794 = vmatmul.mubr.bf16.gmra.mrb[0].mxu0 %v494
      %v795 = vpop.f32.mrb[0].mxu0
      %v796 = vadd.f32 %v303, %v795
      %v797 = vpop.f32.mrb[0].mxu0
      %v798 = vpop.f32.mrb[0].mxu0
      %v799 = vadd.f32 %v303, %v798
      %v800 = vpop.f32.mrb[0].mxu0
      %801 = vmatprep.mubr.bf16.mxu0 %v498
      %802 = vmatmul.mubr.bf16.gmra.mrb[0].mxu0 %v497
      %v803 = vpop.f32.mrb[0].mxu0
      %v804 = vadd.f32 %v303, %v803
      %v805 = vpop.f32.mrb[0].mxu0
      %v806 = vpop.f32.mrb[0].mxu0
      %v807 = vadd.f32 %v303, %v806
      %v808 = vpop.f32.mrb[0].mxu0
      %809 = vmatprep.mubr.bf16.mxu0 %v501
      %810 = vmatmul.mubr.bf16.gmra.mrb[0].mxu0 %v500
      %v811 = vpop.f32.mrb[0].mxu0
      %v812 = vadd.f32 %v303, %v811
      %v813 = vpop.f32.mrb[0].mxu0
      %v814 = vpop.f32.mrb[0].mxu0
      %v815 = vadd.f32 %v303, %v814
      %v816 = vpop.f32.mrb[0].mxu0
      %817 = vmatprep.mubr.bf16.mxu0 %v504
      %818 = vmatmul.mubr.bf16.gmra.mrb[0].mxu0 %v503
      %v819 = vpop.f32.mrb[0].mxu0
      %v820 = vadd.f32 %v303, %v819
      %v821 = vpop.f32.mrb[0].mxu0
      %v822 = vpop.f32.mrb[0].mxu0
      %v823 = vadd.f32 %v303, %v822
      %v824 = vpop.f32.mrb[0].mxu0
      %825 = vmatprep.mubr.bf16.mxu0 %v507
      %826 = vmatmul.mubr.bf16.gmra.mrb[0].mxu0 %v506
      %v827 = vpop.f32.mrb[0].mxu0
      %v828 = vadd.f32 %v303, %v827
      %v829 = vpop.f32.mrb[0].mxu0
      %v830 = vpop.f32.mrb[0].mxu0
      %v831 = vadd.f32 %v303, %v830
      %v832 = vpop.f32.mrb[0].mxu0
      %833 = vmatprep.mubr.bf16.mxu0 %v510
      %834 = vmatmul.mubr.bf16.gmra.mrb[0].mxu0 %v509
      %v835 = vpop.f32.mrb[0].mxu0
      %v836 = vadd.f32 %v303, %v835
      %v837 = vpop.f32.mrb[0].mxu0
      %v838 = vpop.f32.mrb[0].mxu0
      %v839 = vadd.f32 %v303, %v838
      %v840 = vpop.f32.mrb[0].mxu0
      %841 = vmatprep.mubr.bf16.mxu0 %v513
      %842 = vmatmul.mubr.bf16.gmra.mrb[0].mxu0 %v512
      %v843 = vpop.f32.mrb[0].mxu0
      %v844 = vadd.f32 %v303, %v843
      %v845 = vpop.f32.mrb[0].mxu0
      %v846 = vpop.f32.mrb[0].mxu0
      %v847 = vadd.f32 %v303, %v846
      %v848 = vpop.f32.mrb[0].mxu0
      %849 = vmatprep.mubr.bf16.mxu0 %v516
      %850 = vmatmul.mubr.bf16.gmra.mrb[0].mxu0 %v515
      %v851 = vpop.f32.mrb[0].mxu0
      %v852 = vadd.f32 %v303, %v851
      %v853 = vpop.f32.mrb[0].mxu0
      %v854 = vpop.f32.mrb[0].mxu0
      %v855 = vadd.f32 %v303, %v854
      %v856 = vpop.f32.mrb[0].mxu0
      %857 = vmatprep.mubr.bf16.mxu0 %v519
      %858 = vmatmul.mubr.bf16.gmra.mrb[0].mxu0 %v518
      %v859 = vpop.f32.mrb[0].mxu0
      %v860 = vadd.f32 %v303, %v859
      %v861 = vpop.f32.mrb[0].mxu0
      %v862 = vpop.f32.mrb[0].mxu0
      %v863 = vadd.f32 %v303, %v862
      %v864 = vpop.f32.mrb[0].mxu0
      %865 = vmatprep.mubr.bf16.mxu0 %v522
      %866 = vmatmul.mubr.bf16.gmra.mrb[0].mxu0 %v521
      %v867 = vpop.f32.mrb[0].mxu0
      %v868 = vadd.f32 %v303, %v867
      %v869 = vpop.f32.mrb[0].mxu0
      %v870 = vpop.f32.mrb[0].mxu0
      %v871 = vadd.f32 %v303, %v870
      %v872 = vpop.f32.mrb[0].mxu0
      %873 = vmatprep.mubr.bf16.mxu0 %v525
      %874 = vmatmul.mubr.bf16.gmra.mrb[0].mxu0 %v524
      %v875 = vpop.f32.mrb[0].mxu0
      %v876 = vadd.f32 %v303, %v875
      %v877 = vpop.f32.mrb[0].mxu0
      %v878 = vpop.f32.mrb[0].mxu0
      %v879 = vadd.f32 %v303, %v878
      %v880 = vpop.f32.mrb[0].mxu0
      %881 = vmatprep.mubr.bf16.mxu0 %v528
      %882 = vmatmul.mubr.bf16.gmra.mrb[0].mxu0 %v527
      %v883 = vpop.f32.mrb[0].mxu0
      %v884 = vadd.f32 %v303, %v883
      %v885 = vpop.f32.mrb[0].mxu0
      %v886 = vpop.f32.mrb[0].mxu0
      %v887 = vadd.f32 %v303, %v886
      %v888 = vpop.f32.mrb[0].mxu0
      %889 = vmatprep.mubr.bf16.mxu0 %v531
      %890 = vmatmul.mubr.bf16.gmra.mrb[0].mxu0 %v530
      %v891 = vpop.f32.mrb[0].mxu0
      %v892 = vadd.f32 %v303, %v891
      %v893 = vpop.f32.mrb[0].mxu0
      %v894 = vpop.f32.mrb[0].mxu0
      %v895 = vadd.f32 %v303, %v894
      %v896 = vpop.f32.mrb[0].mxu0
      %897 = vmatprep.mubr.bf16.mxu0 %v534
      %898 = vmatmul.mubr.bf16.gmra.mrb[0].mxu0 %v533
      %v899 = vpop.f32.mrb[0].mxu0
      %v900 = vadd.f32 %v303, %v899
      %v901 = vpop.f32.mrb[0].mxu0
      %v902 = vpop.f32.mrb[0].mxu0
      %v903 = vadd.f32 %v303, %v902
      %v904 = vpop.f32.mrb[0].mxu0
      %905 = vmatprep.mubr.bf16.mxu0 %v537
      %906 = vmatmul.mubr.bf16.gmra.mrb[0].mxu0 %v536
      %v907 = vpop.f32.mrb[0].mxu0
      %v908 = vadd.f32 %v303, %v907
      %v909 = vpop.f32.mrb[0].mxu0
      %v910 = vpop.f32.mrb[0].mxu0
      %v911 = vadd.f32 %v303, %v910
      %v912 = vpop.f32.mrb[0].mxu0
      %913 = vdwg.mxu0
      %914 = vmatprep.subr.bf16.mxu0 0
      %915 = vmatpush1.bf16.msra.mxu0 %v705
      %916 = vmatprep.subr.bf16.mxu0 0
      %917 = vmatpush1.bf16.msra.mxu0 %v706
      %918 = vmatprep.subr.bf16.mxu0 0
      %919 = vmatpush1.bf16.msra.mxu0 %v707
      %920 = vmatprep.subr.bf16.mxu0 0
      %921 = vmatpush1.bf16.msra.mxu0 %v708
      %922 = vmatprep.subr.bf16.mxu0 0
      %923 = vmatpush1.bf16.msra.mxu0 %v709
      %924 = vmatprep.subr.bf16.mxu0 0
      %925 = vmatpush1.bf16.msra.mxu0 %v710
      %926 = vmatprep.subr.bf16.mxu0 0
      %927 = vmatpush1.bf16.msra.mxu0 %v711
      %928 = vmatprep.subr.bf16.mxu0 0
      %929 = vmatpush1.bf16.msra.mxu0 %v712
      %930 = vmatprep.subr.bf16.mxu0 0
      %931 = vmatpush1.bf16.msra.mxu0 0
      %932 = vmatprep.subr.bf16.mxu0 0
      %933 = vmatpush1.bf16.msra.mxu0 0
      %934 = vmatprep.subr.bf16.mxu0 0
      %935 = vmatpush1.bf16.msra.mxu0 0
      %936 = vmatprep.subr.bf16.mxu0 0
      %937 = vmatpush1.bf16.msra.mxu0 0
      %938 = vmatprep.subr.bf16.mxu0 0
      %939 = vmatpush1.bf16.msra.mxu0 0
      %940 = vmatprep.subr.bf16.mxu0 0
      %941 = vmatpush1.bf16.msra.mxu0 0
      %942 = vmatprep.subr.bf16.mxu0 0
      %943 = vmatpush1.bf16.msra.mxu0 0
      %944 = vmatprep.subr.bf16.mxu0 0
      %945 = vmatpush1.bf16.msra.mxu0 0
      %946 = vmatprep.mubr.bf16.mxu0 0
      %947 = vmatmul.mubr.bf16.gmra.mrb[0].mxu0 %v487
      %v948 = vpop.f32.mrb[0].mxu0
      %v949 = vadd.f32 %v772, %v948
      %v950 = vpop.f32.mrb[0].mxu0
      %v951 = vpop.f32.mrb[0].mxu0
      %v952 = vadd.f32 %v775, %v951
      %v953 = vpop.f32.mrb[0].mxu0
      %954 = vmatprep.mubr.bf16.mxu0 0
      %955 = vmatmul.mubr.bf16.gmra.mrb[0].mxu0 %v490
      %v956 = vpop.f32.mrb[0].mxu0
      %v957 = vadd.f32 %v780, %v956
      %v958 = vpop.f32.mrb[0].mxu0
      %v959 = vpop.f32.mrb[0].mxu0
      %v960 = vadd.f32 %v783, %v959
      %v961 = vpop.f32.mrb[0].mxu0
      %962 = vmatprep.mubr.bf16.mxu0 0
      %963 = vmatmul.mubr.bf16.gmra.mrb[0].mxu0 %v493
      %v964 = vpop.f32.mrb[0].mxu0
      %v965 = vadd.f32 %v788, %v964
      %v966 = vpop.f32.mrb[0].mxu0
      %v967 = vpop.f32.mrb[0].mxu0
      %v968 = vadd.f32 %v791, %v967
      %v969 = vpop.f32.mrb[0].mxu0
      %970 = vmatprep.mubr.bf16.mxu0 0
      %971 = vmatmul.mubr.bf16.gmra.mrb[0].mxu0 %v496
      %v972 = vpop.f32.mrb[0].mxu0
      %v973 = vadd.f32 %v796, %v972
      %v974 = vpop.f32.mrb[0].mxu0
      %v975 = vpop.f32.mrb[0].mxu0
      %v976 = vadd.f32 %v799, %v975
      %v977 = vpop.f32.mrb[0].mxu0
      %978 = vmatprep.mubr.bf16.mxu0 0
      %979 = vmatmul.mubr.bf16.gmra.mrb[0].mxu0 %v499
      %v980 = vpop.f32.mrb[0].mxu0
      %v981 = vadd.f32 %v804, %v980
      %v982 = vpop.f32.mrb[0].mxu0
      %v983 = vpop.f32.mrb[0].mxu0
      %v984 = vadd.f32 %v807, %v983
      %v985 = vpop.f32.mrb[0].mxu0
      %986 = vmatprep.mubr.bf16.mxu0 0
      %987 = vmatmul.mubr.bf16.gmra.mrb[0].mxu0 %v502
      %v988 = vpop.f32.mrb[0].mxu0
      %v989 = vadd.f32 %v812, %v988
      %v990 = vpop.f32.mrb[0].mxu0
      %v991 = vpop.f32.mrb[0].mxu0
      %v992 = vadd.f32 %v815, %v991
      %v993 = vpop.f32.mrb[0].mxu0
      %994 = vmatprep.mubr.bf16.mxu0 0
      %995 = vmatmul.mubr.bf16.gmra.mrb[0].mxu0 %v505
      %v996 = vpop.f32.mrb[0].mxu0
      %v997 = vadd.f32 %v820, %v996
      %v998 = vpop.f32.mrb[0].mxu0
      %v999 = vpop.f32.mrb[0].mxu0
      %v1000 = vadd.f32 %v823, %v999
      %v1001 = vpop.f32.mrb[0].mxu0
      %1002 = vmatprep.mubr.bf16.mxu0 0
      %1003 = vmatmul.mubr.bf16.gmra.mrb[0].mxu0 %v508
      %v1004 = vpop.f32.mrb[0].mxu0
      %v1005 = vadd.f32 %v828, %v1004
      %v1006 = vpop.f32.mrb[0].mxu0
      %v1007 = vpop.f32.mrb[0].mxu0
      %v1008 = vadd.f32 %v831, %v1007
      %v1009 = vpop.f32.mrb[0].mxu0
      %1010 = vmatprep.mubr.bf16.mxu0 0
      %1011 = vmatmul.mubr.bf16.gmra.mrb[0].mxu0 %v511
      %v1012 = vpop.f32.mrb[0].mxu0
      %v1013 = vadd.f32 %v836, %v1012
      %v1014 = vpop.f32.mrb[0].mxu0
      %v1015 = vpop.f32.mrb[0].mxu0
      %v1016 = vadd.f32 %v839, %v1015
      %v1017 = vpop.f32.mrb[0].mxu0
      %1018 = vmatprep.mubr.bf16.mxu0 0
      %1019 = vmatmul.mubr.bf16.gmra.mrb[0].mxu0 %v514
      %v1020 = vpop.f32.mrb[0].mxu0
      %v1021 = vadd.f32 %v844, %v1020
      %v1022 = vpop.f32.mrb[0].mxu0
      %v1023 = vpop.f32.mrb[0].mxu0
      %v1024 = vadd.f32 %v847, %v1023
      %v1025 = vpop.f32.mrb[0].mxu0
      %1026 = vmatprep.mubr.bf16.mxu0 0
      %1027 = vmatmul.mubr.bf16.gmra.mrb[0].mxu0 %v517
      %v1028 = vpop.f32.mrb[0].mxu0
      %v1029 = vadd.f32 %v852, %v1028
      %v1030 = vpop.f32.mrb[0].mxu0
      %v1031 = vpop.f32.mrb[0].mxu0
      %v1032 = vadd.f32 %v855, %v1031
      %v1033 = vpop.f32.mrb[0].mxu0
      %1034 = vmatprep.mubr.bf16.mxu0 0
      %1035 = vmatmul.mubr.bf16.gmra.mrb[0].mxu0 %v520
      %v1036 = vpop.f32.mrb[0].mxu0
      %v1037 = vadd.f32 %v860, %v1036
      %v1038 = vpop.f32.mrb[0].mxu0
      %v1039 = vpop.f32.mrb[0].mxu0
      %v1040 = vadd.f32 %v863, %v1039
      %v1041 = vpop.f32.mrb[0].mxu0
      %1042 = vmatprep.mubr.bf16.mxu0 0
      %1043 = vmatmul.mubr.bf16.gmra.mrb[0].mxu0 %v523
      %v1044 = vpop.f32.mrb[0].mxu0
      %v1045 = vadd.f32 %v868, %v1044
      %v1046 = vpop.f32.mrb[0].mxu0
      %v1047 = vpop.f32.mrb[0].mxu0
      %v1048 = vadd.f32 %v871, %v1047
      %v1049 = vpop.f32.mrb[0].mxu0
      %1050 = vmatprep.mubr.bf16.mxu0 0
      %1051 = vmatmul.mubr.bf16.gmra.mrb[0].mxu0 %v526
      %v1052 = vpop.f32.mrb[0].mxu0
      %v1053 = vadd.f32 %v876, %v1052
      %v1054 = vpop.f32.mrb[0].mxu0
      %v1055 = vpop.f32.mrb[0].mxu0
      %v1056 = vadd.f32 %v879, %v1055
      %v1057 = vpop.f32.mrb[0].mxu0
      %1058 = vmatprep.mubr.bf16.mxu0 0
      %1059 = vmatmul.mubr.bf16.gmra.mrb[0].mxu0 %v529
      %v1060 = vpop.f32.mrb[0].mxu0
      %v1061 = vadd.f32 %v884, %v1060
      %v1062 = vpop.f32.mrb[0].mxu0
      %v1063 = vpop.f32.mrb[0].mxu0
      %v1064 = vadd.f32 %v887, %v1063
      %v1065 = vpop.f32.mrb[0].mxu0
      %1066 = vmatprep.mubr.bf16.mxu0 0
      %1067 = vmatmul.mubr.bf16.gmra.mrb[0].mxu0 %v532
      %v1068 = vpop.f32.mrb[0].mxu0
      %v1069 = vadd.f32 %v892, %v1068
      %v1070 = vpop.f32.mrb[0].mxu0
      %v1071 = vpop.f32.mrb[0].mxu0
      %v1072 = vadd.f32 %v895, %v1071
      %v1073 = vpop.f32.mrb[0].mxu0
      %1074 = vmatprep.mubr.bf16.mxu0 0
      %1075 = vmatmul.mubr.bf16.gmra.mrb[0].mxu0 %v535
      %v1076 = vpop.f32.mrb[0].mxu0
      %v1077 = vadd.f32 %v900, %v1076
      %v1078 = vpop.f32.mrb[0].mxu0
      %v1079 = vpop.f32.mrb[0].mxu0
      %v1080 = vadd.f32 %v903, %v1079
      %v1081 = vpop.f32.mrb[0].mxu0
      %1082 = vmatprep.mubr.bf16.mxu0 0
      %1083 = vmatmul.mubr.bf16.gmra.mrb[0].mxu0 %v538
      %v1084 = vpop.f32.mrb[0].mxu0
      %v1085 = vadd.f32 %v908, %v1084
      %v1086 = vpop.f32.mrb[0].mxu0
      %v1087 = vpop.f32.mrb[0].mxu0
      %v1088 = vadd.f32 %v911, %v1087
      %v1089 = vpop.f32.mrb[0].mxu0
      %1090 = vdwg.mxu0
      %1091 = vst [vmem:[%s175] sm:$0xff] %v949
      %1092 = vst [vmem:[%s175 + $0x8] sm:$0xff] %v952
      %1093 = vst [vmem:[%s175 + $0x10] sm:$0xff] %v957
      %1094 = vst [vmem:[%s175 + $0x18] sm:$0xff] %v960
      %1095 = vst [vmem:[%s175 + $0x20] sm:$0xff] %v965
      %1096 = vst [vmem:[%s175 + $0x28] sm:$0xff] %v968
      %1097 = vst [vmem:[%s175 + $0x30] sm:$0xff] %v973
      %1098 = vst [vmem:[%s175 + $0x38] sm:$0xff] %v976
      %1099 = vst [vmem:[%s175 + $0x40] sm:$0xff] %v981
      %1100 = vst [vmem:[%s175 + $0x48] sm:$0xff] %v984
      %1101 = vst [vmem:[%s175 + $0x50] sm:$0xff] %v989
      %1102 = vst [vmem:[%s175 + $0x58] sm:$0xff] %v992
      %1103 = vst [vmem:[%s175 + $0x60] sm:$0xff] %v997
      %1104 = vst [vmem:[%s175 + $0x68] sm:$0xff] %v1000
      %1105 = vst [vmem:[%s175 + $0x70] sm:$0xff] %v1005
      %1106 = vst [vmem:[%s175 + $0x78] sm:$0xff] %v1008
      %1107 = vst [vmem:[%s175 + $0x80] sm:$0xff] %v1013
      %1108 = vst [vmem:[%s175 + $0x88] sm:$0xff] %v1016
      %1109 = vst [vmem:[%s175 + $0x90] sm:$0xff] %v1021
      %1110 = vst [vmem:[%s175 + $0x98] sm:$0xff] %v1024
      %1111 = vst [vmem:[%s175 + $0xa0] sm:$0xff] %v1029
      %1112 = vst [vmem:[%s175 + $0xa8] sm:$0xff] %v1032
      %1113 = vst [vmem:[%s175 + $0xb0] sm:$0xff] %v1037
      %1114 = vst [vmem:[%s175 + $0xb8] sm:$0xff] %v1040
      %1115 = vst [vmem:[%s175 + $0xc0] sm:$0xff] %v1045
      %1116 = vst [vmem:[%s175 + $0xc8] sm:$0xff] %v1048
      %1117 = vst [vmem:[%s175 + $0xd0] sm:$0xff] %v1053
      %1118 = vst [vmem:[%s175 + $0xd8] sm:$0xff] %v1056
      %1119 = vst [vmem:[%s175 + $0xe0] sm:$0xff] %v1061
      %1120 = vst [vmem:[%s175 + $0xe8] sm:$0xff] %v1064
      %1121 = vst [vmem:[%s175 + $0xf0] sm:$0xff] %v1069
      %1122 = vst [vmem:[%s175 + $0xf8] sm:$0xff] %v1072
      %1123 = vst [vmem:[%s175 + $0x100] sm:$0xff] %v1077
      %1124 = vst [vmem:[%s175 + $0x108] sm:$0xff] %v1080
      %1125 = vst [vmem:[%s175 + $0x110] sm:$0xff] %v1085
      %1126 = vst [vmem:[%s175 + $0x118] sm:$0xff] %v1088
      %s1127 = smul.u32 36, %s14
      %p1128 = scmp.lt.s32.totalorder %s1127, 71
      %s1129 = scalar_select %p1128, %s1127, 71
      %s1130 = smul.addr %s1129, 8
      %s1131 = scalar_lea.vmem %s3, %s1130
      // Predicated region
      $region33: #{spatial_detail_enhancement.4} parent=31 // pred_check
        %p1132 = pneg %p100
      $region34: #{spatial_detail_enhancement.4} parent=31 // pred_check_branch
        %1134 = sbr.rel (%p1132) target = $region36
      $region35: #{spatial_detail_enhancement.4} parent=31 // pred_region
        %s1135 = smul.u32 36, %s14
      $region36: #{spatial_detail_enhancement.4} parent=31 // pred_fallthru
        _
    $region32: #{spatial_detail_enhancement.4} parent=5 // pred_fallthru
      _
    %p1136 = scmp.le.s32.totalorder 2, %s9
    // Predicated region
    $region37: #{spatial_detail_enhancement.4} parent=5 // pred_check
      %p1137 = pneg %p1136
    $region38: #{spatial_detail_enhancement.4} parent=5 // pred_check_branch
      %1139 = sbr.rel (%p1137) target = $region40
    $region39: #{spatial_detail_enhancement.4} parent=5 // pred_region
      %s1140 = ssub.s32 %s9, 2
      // Predicated region
      $region41: #{spatial_detail_enhancement.4} parent=39 // pred_check
        %p1141 = pneg %p106
      $region42: #{spatial_detail_enhancement.4} parent=39 // pred_check_branch
        %1143 = sbr.rel (%p1141) target = $region44
      $region43: #{spatial_detail_enhancement.4} parent=39 // pred_region
        %s1144 = smul.u32 36, %s15
        %p1145 = scmp.lt.s32.totalorder %s1144, 71
        %s1146 = scalar_select %p1145, %s1144, 71
        %s1147 = smul.addr %s1146, 8
        %s1148 = scalar_lea.vmem %s3, %s1147
      $region44: #{spatial_detail_enhancement.4} parent=39 // pred_fallthru
        _
    $region40: #{spatial_detail_enhancement.4} parent=5 // pred_fallthru
      _
  $region6: #{spatial_detail_enhancement.4} parent=0 // loop_footer
    %s13 = sadd.s32 1, %s9
  $region7: #{spatial_detail_enhancement.4} parent=0 // loop_footer_branch
    %8 = sbr.rel target = $region3
  $region8: #{spatial_detail_enhancement.4} parent=0 // loop_exit
    _

// kernel: spatial_detail_enhancement.5
$region0: #{spatial_detail_enhancement.5}
  #allocation0 [shape = 'u32[]', space=smem, size = 0x4, offset = 0x4, fixed_abs, tag = 'smem constant byte address 0x4 - core index']
  #allocation1 [shape = 'u32[144,128]{1,0:T(1,128)}', space=vmem, size = 0x12000, scoped, tag = 'internal scratch']
  %s0 = inlined_call_operand.vmem [shape: bf16[64,360], index: 0, kind: input, shape index: {}]
  %s1 = inlined_call_operand.vmem [shape: bf16[360,128], index: 1, kind: input, shape index: {}]
  %s2 = inlined_call_operand.vmem [shape: f32[1,128], index: 2, kind: input, shape index: {}]
  %s3 = inlined_call_operand.hbm [shape: f32[64,128], index: 3, kind: output, shape index: {}]
  %s4 = sld [smem:[#allocation0]]
  $region22: #{spatial_detail_enhancement.5} parent=0
    _
  %s6 = ssub.s32 1, %s4
  %s7 = scalar_select 0, %s6, %s4
  $region1: #{spatial_detail_enhancement.5} parent=0
    #allocation2 [shape = 'u8[32768]{0}', space=vmem, size = 0x8000, scoped, tag = 'output window, operand 0, single buffered']
    #allocation3 [shape = 's32[1]{0}', space=sflag, size = 0x4, scoped, tag = 'scoped memory for spatial_detail_enhancement.5']
    %8 = vsyncpa [#allocation3], 0
    // Predicated region
    $region2: #{spatial_detail_enhancement.5} parent=1 // pred_check
      _
    $region3: #{spatial_detail_enhancement.5} parent=1 // pred_check_branch
      %10 = sbr.rel (0) target = $region5
    $region4: #{spatial_detail_enhancement.5} parent=1 // pred_region
      _
    $region5: #{spatial_detail_enhancement.5} parent=1 // pred_fallthru
      _
    // Predicated region
    $region6: #{spatial_detail_enhancement.5} parent=1 // pred_check
      _
    $region7: #{spatial_detail_enhancement.5} parent=1 // pred_check_branch
      %12 = sbr.rel (0) target = $region9
    $region8: #{spatial_detail_enhancement.5} parent=1 // pred_region
      _
    $region9: #{spatial_detail_enhancement.5} parent=1 // pred_fallthru
      _
    // Predicated region
    $region10: #{spatial_detail_enhancement.5} parent=1 // pred_check
      _
    $region11: #{spatial_detail_enhancement.5} parent=1 // pred_check_branch
      %14 = sbr.rel (0) target = $region13
    $region12: #{spatial_detail_enhancement.5} parent=1 // pred_region
      _
    $region13: #{spatial_detail_enhancement.5} parent=1 // pred_fallthru
      _
    %v16 = vld [vmem:[%s0] sm:$0xff]
    %v17 = vld [vmem:[%s0 + $0x8] sm:$0xf]
    %v18 = vld [vmem:[%s0 + $0xc] sm:$0xff]
    %v19 = vld [vmem:[%s0 + $0x14] sm:$0xf]
    %v20 = vld [vmem:[%s0 + $0x18] sm:$0xff]
    %v21 = vld [vmem:[%s0 + $0x20] sm:$0xf]
    %v22 = vld [vmem:[%s0 + $0x24] sm:$0xff]
    %v23 = vld [vmem:[%s0 + $0x2c] sm:$0xf]
    %v24 = vld [vmem:[%s0 + $0x30] sm:$0xff]
    %v25 = vld [vmem:[%s0 + $0x38] sm:$0xf]
    %v26 = vld [vmem:[%s0 + $0x3c] sm:$0xff]
    %v27 = vld [vmem:[%s0 + $0x44] sm:$0xf]
    %v28 = vld [vmem:[%s0 + $0x48] sm:$0xff]
    %v29 = vld [vmem:[%s0 + $0x50] sm:$0xf]
    %v30 = vld [vmem:[%s0 + $0x54] sm:$0xff]
    %v31 = vld [vmem:[%s0 + $0x5c] sm:$0xf]
    %v32 = vld [vmem:[%s1] sm:$0xf]
    %v33 = vld [vmem:[%s1 + $0x4] sm:$0xf]
    %v34 = vld [vmem:[%s1 + $0x8] sm:$0xf]
    %v35 = vld [vmem:[%s1 + $0xc] sm:$0xf]
    %v36 = vld [vmem:[%s1 + $0x10] sm:$0xf]
    %v37 = vld [vmem:[%s1 + $0x14] sm:$0xf]
    %v38 = vld [vmem:[%s1 + $0x18] sm:$0xf]
    %v39 = vld [vmem:[%s1 + $0x1c] sm:$0xf]
    %v40 = vld [vmem:[%s1 + $0x20] sm:$0xf]
    %v41 = vld [vmem:[%s1 + $0x24] sm:$0xf]
    %v42 = vld [vmem:[%s1 + $0x28] sm:$0xf]
    %v43 = vld [vmem:[%s1 + $0x2c] sm:$0xf]
    %v44 = vld [vmem:[%s1 + $0x30] sm:$0xf]
    %v45 = vld [vmem:[%s1 + $0x34] sm:$0xf]
    %v46 = vld [vmem:[%s1 + $0x38] sm:$0xf]
    %v47 = vld [vmem:[%s1 + $0x3c] sm:$0xf]
    %v48 = vld [vmem:[%s1 + $0x40] sm:$0xf]
    %v49 = vld [vmem:[%s1 + $0x44] sm:$0xf]
    %v50 = vld [vmem:[%s1 + $0x48] sm:$0xf]
    %v51 = vld [vmem:[%s1 + $0x4c] sm:$0xf]
    %v52 = vld [vmem:[%s1 + $0x50] sm:$0xf]
    %v53 = vld [vmem:[%s1 + $0x54] sm:$0xf]
    %v54 = vld [vmem:[%s1 + $0x58] sm:$0xf]
    %v55 = vld [vmem:[%s1 + $0x5c] sm:$0xf]
    %v56 = vld [vmem:[%s1 + $0x60] sm:$0xf]
    %v57 = vld [vmem:[%s1 + $0x64] sm:$0xf]
    %v58 = vld [vmem:[%s1 + $0x68] sm:$0xf]
    %v59 = vld [vmem:[%s1 + $0x6c] sm:$0xf]
    %v60 = vld [vmem:[%s1 + $0x70] sm:$0xf]
    %v61 = vld [vmem:[%s1 + $0x74] sm:$0xf]
    %v62 = vld [vmem:[%s1 + $0x78] sm:$0xf]
    %v63 = vld [vmem:[%s1 + $0x7c] sm:$0xf]
    %v64 = vld [vmem:[%s1 + $0x80] sm:$0xf]
    %v65 = vld [vmem:[%s1 + $0x84] sm:$0xf]
    %v66 = vld [vmem:[%s1 + $0x88] sm:$0xf]
    %v67 = vld [vmem:[%s1 + $0x8c] sm:$0xf]
    %v68 = vld [vmem:[%s1 + $0x90] sm:$0xf]
    %v69 = vld [vmem:[%s1 + $0x94] sm:$0xf]
    %v70 = vld [vmem:[%s1 + $0x98] sm:$0xf]
    %v71 = vld [vmem:[%s1 + $0x9c] sm:$0xf]
    %v72 = vld [vmem:[%s1 + $0xa0] sm:$0xf]
    %v73 = vld [vmem:[%s1 + $0xa4] sm:$0xf]
    %v74 = vld [vmem:[%s1 + $0xa8] sm:$0xf]
    %v75 = vld [vmem:[%s1 + $0xac] sm:$0xf]
    %v76 = vld [vmem:[%s1 + $0xb0] sm:$0xf]
    %v77 = vld [vmem:[%s2] sm:$0x1]
    %v79 = vlaneseq
    %v80 = vshrl.u32 %v79, 7
    %v81 = vsub.s32 0, %v80
    %v82 = vrot.slane %v77, %v81
    %v100 = vunpack.c.l.b16 %v16
    %v101 = vunpack.c.h.b16 %v16
    %v102 = vunpack.c.l.b16 %v17
    %v103 = vunpack.c.l.b16 %v18
    %v104 = vunpack.c.h.b16 %v18
    %v105 = vunpack.c.l.b16 %v19
    %v106 = vunpack.c.l.b16 %v20
    %v107 = vunpack.c.h.b16 %v20
    %v108 = vunpack.c.l.b16 %v21
    %v109 = vunpack.c.l.b16 %v22
    %v110 = vunpack.c.h.b16 %v22
    %v111 = vunpack.c.l.b16 %v23
    %v112 = vunpack.c.l.b16 %v24
    %v113 = vunpack.c.h.b16 %v24
    %v114 = vunpack.c.l.b16 %v25
    %v115 = vunpack.c.l.b16 %v26
    %v116 = vunpack.c.h.b16 %v26
    %v117 = vunpack.c.l.b16 %v27
    %v118 = vunpack.c.l.b16 %v28
    %v119 = vunpack.c.h.b16 %v28
    %v120 = vunpack.c.l.b16 %v29
    %v121 = vunpack.c.l.b16 %v30
    %v122 = vunpack.c.h.b16 %v30
    %v123 = vunpack.c.l.b16 %v31
    %v124 = vpack.c.b16 %v103, %v100
    %v125 = vpack.c.b16 %v104, %v101
    %v126 = vpack.c.b16 %v105, %v102
    %v127 = vpack.c.b16 %v109, %v106
    %v128 = vpack.c.b16 %v110, %v107
    %v129 = vpack.c.b16 %v111, %v108
    %v130 = vpack.c.b16 %v115, %v112
    %v131 = vpack.c.b16 %v116, %v113
    %v132 = vpack.c.b16 %v117, %v114
    %v133 = vpack.c.b16 %v121, %v118
    %v134 = vpack.c.b16 %v122, %v119
    %v135 = vpack.c.b16 %v123, %v120
    %v189 = vunpack.c.l.b16 %v32
    %v190 = vunpack.c.l.b16 %v33
    %v191 = vunpack.c.l.b16 %v34
    %v192 = vunpack.c.l.b16 %v35
    %v193 = vunpack.c.l.b16 %v36
    %v194 = vunpack.c.l.b16 %v37
    %v195 = vunpack.c.l.b16 %v38
    %v196 = vunpack.c.l.b16 %v39
    %v197 = vunpack.c.l.b16 %v40
    %v198 = vunpack.c.l.b16 %v41
    %v199 = vunpack.c.l.b16 %v42
    %v200 = vunpack.c.l.b16 %v43
    %v201 = vunpack.c.l.b16 %v44
    %v202 = vunpack.c.l.b16 %v45
    %v203 = vunpack.c.l.b16 %v46
    %v204 = vunpack.c.l.b16 %v47
    %v205 = vunpack.c.l.b16 %v48
    %v206 = vunpack.c.l.b16 %v49
    %v207 = vunpack.c.l.b16 %v50
    %v208 = vunpack.c.l.b16 %v51
    %v209 = vunpack.c.l.b16 %v52
    %v210 = vunpack.c.l.b16 %v53
    %v211 = vunpack.c.l.b16 %v54
    %v212 = vunpack.c.l.b16 %v55
    %v213 = vunpack.c.l.b16 %v56
    %v214 = vunpack.c.l.b16 %v57
    %v215 = vunpack.c.l.b16 %v58
    %v216 = vunpack.c.l.b16 %v59
    %v217 = vunpack.c.l.b16 %v60
    %v218 = vunpack.c.l.b16 %v61
    %v219 = vunpack.c.l.b16 %v62
    %v220 = vunpack.c.l.b16 %v63
    %v221 = vunpack.c.l.b16 %v64
    %v222 = vunpack.c.l.b16 %v65
    %v223 = vunpack.c.l.b16 %v66
    %v224 = vunpack.c.l.b16 %v67
    %v225 = vunpack.c.l.b16 %v68
    %v226 = vunpack.c.l.b16 %v69
    %v227 = vunpack.c.l.b16 %v70
    %v228 = vunpack.c.l.b16 %v71
    %v229 = vunpack.c.l.b16 %v72
    %v230 = vunpack.c.l.b16 %v73
    %v231 = vunpack.c.l.b16 %v74
    %v232 = vunpack.c.l.b16 %v75
    %v233 = vunpack.c.l.b16 %v76
    %v234 = vpack.c.b16 %v190, %v189
    %v235 = vpack.c.b16 %v192, %v191
    %v236 = vpack.c.b16 %v194, %v193
    %v237 = vpack.c.b16 %v196, %v195
    %v238 = vpack.c.b16 %v198, %v197
    %v239 = vpack.c.b16 %v200, %v199
    %v240 = vpack.c.b16 %v202, %v201
    %v241 = vpack.c.b16 %v204, %v203
    %v242 = vpack.c.b16 %v206, %v205
    %v243 = vpack.c.b16 %v208, %v207
    %v244 = vpack.c.b16 %v210, %v209
    %v245 = vpack.c.b16 %v212, %v211
    %v246 = vpack.c.b16 %v214, %v213
    %v247 = vpack.c.b16 %v216, %v215
    %v248 = vpack.c.b16 %v218, %v217
    %v249 = vpack.c.b16 %v220, %v219
    %v250 = vpack.c.b16 %v222, %v221
    %v251 = vpack.c.b16 %v224, %v223
    %v252 = vpack.c.b16 %v226, %v225
    %v253 = vpack.c.b16 %v228, %v227
    %v254 = vpack.c.b16 %v230, %v229
    %v255 = vpack.c.b16 %v232, %v231
    %v256 = vpack.c.b16 %v233, %v233
    %vm279 = vcmask 850944
    %v281 = vsel %vm279, %v126, 0
    %v284 = vsel %vm279, %v129, 0
    %v287 = vsel %vm279, %v132, 0
    %v290 = vsel %vm279, %v135, 0
    %vm292 = vcmask 1043456
    %v294 = vsel %vm292, %v256, 0
    %296 = vmatprep.subr.bf16.mxu0 0
    %297 = vmatpush1.bf16.msra.mxu0 %v234
    %298 = vmatprep.subr.bf16.mxu0 0
    %299 = vmatpush1.bf16.msra.mxu0 %v235
    %300 = vmatprep.subr.bf16.mxu0 0
    %301 = vmatpush1.bf16.msra.mxu0 %v236
    %302 = vmatprep.subr.bf16.mxu0 0
    %303 = vmatpush1.bf16.msra.mxu0 %v237
    %304 = vmatprep.subr.bf16.mxu0 0
    %305 = vmatpush1.bf16.msra.mxu0 %v238
    %306 = vmatprep.subr.bf16.mxu0 0
    %307 = vmatpush1.bf16.msra.mxu0 %v239
    %308 = vmatprep.subr.bf16.mxu0 0
    %309 = vmatpush1.bf16.msra.mxu0 %v240
    %310 = vmatprep.subr.bf16.mxu0 0
    %311 = vmatpush1.bf16.msra.mxu0 %v241
    %312 = vmatprep.subr.bf16.mxu0 0
    %313 = vmatpush1.bf16.msra.mxu0 %v242
    %314 = vmatprep.subr.bf16.mxu0 0
    %315 = vmatpush1.bf16.msra.mxu0 %v243
    %316 = vmatprep.subr.bf16.mxu0 0
    %317 = vmatpush1.bf16.msra.mxu0 %v244
    %318 = vmatprep.subr.bf16.mxu0 0
    %319 = vmatpush1.bf16.msra.mxu0 %v245
    %320 = vmatprep.subr.bf16.mxu0 0
    %321 = vmatpush1.bf16.msra.mxu0 %v246
    %322 = vmatprep.subr.bf16.mxu0 0
    %323 = vmatpush1.bf16.msra.mxu0 %v247
    %324 = vmatprep.subr.bf16.mxu0 0
    %325 = vmatpush1.bf16.msra.mxu0 %v248
    %326 = vmatprep.subr.bf16.mxu0 0
    %327 = vmatpush1.bf16.msra.mxu0 %v249
    %328 = vmatprep.mubr.bf16.mxu0 %v125
    %329 = vmatmul.mubr.bf16.gmra.mrb[0].mxu0 %v124
    %v330 = vpop.f32.mrb[0].mxu0
    %v331 = vadd.f32 %v82, %v330
    %v332 = vpop.f32.mrb[0].mxu0
    %v333 = vpop.f32.mrb[0].mxu0
    %v334 = vadd.f32 %v82, %v333
    %v335 = vpop.f32.mrb[0].mxu0
    %336 = vmatprep.mubr.bf16.mxu0 %v128
    %337 = vmatmul.mubr.bf16.gmra.mrb[0].mxu0 %v127
    %v338 = vpop.f32.mrb[0].mxu0
    %v339 = vadd.f32 %v82, %v338
    %v340 = vpop.f32.mrb[0].mxu0
    %v341 = vpop.f32.mrb[0].mxu0
    %v342 = vadd.f32 %v82, %v341
    %v343 = vpop.f32.mrb[0].mxu0
    %344 = vmatprep.mubr.bf16.mxu0 %v131
    %345 = vmatmul.mubr.bf16.gmra.mrb[0].mxu0 %v130
    %v346 = vpop.f32.mrb[0].mxu0
    %v347 = vadd.f32 %v82, %v346
    %v348 = vpop.f32.mrb[0].mxu0
    %v349 = vpop.f32.mrb[0].mxu0
    %v350 = vadd.f32 %v82, %v349
    %v351 = vpop.f32.mrb[0].mxu0
    %352 = vmatprep.mubr.bf16.mxu0 %v134
    %353 = vmatmul.mubr.bf16.gmra.mrb[0].mxu0 %v133
    %v354 = vpop.f32.mrb[0].mxu0
    %v355 = vadd.f32 %v82, %v354
    %v356 = vpop.f32.mrb[0].mxu0
    %v357 = vpop.f32.mrb[0].mxu0
    %v358 = vadd.f32 %v82, %v357
    %v359 = vpop.f32.mrb[0].mxu0
    %360 = vdwg.mxu0
    %361 = vmatprep.subr.bf16.mxu0 0
    %362 = vmatpush1.bf16.msra.mxu0 %v250
    %363 = vmatprep.subr.bf16.mxu0 0
    %364 = vmatpush1.bf16.msra.mxu0 %v251
    %365 = vmatprep.subr.bf16.mxu0 0
    %366 = vmatpush1.bf16.msra.mxu0 %v252
    %367 = vmatprep.subr.bf16.mxu0 0
    %368 = vmatpush1.bf16.msra.mxu0 %v253
    %369 = vmatprep.subr.bf16.mxu0 0
    %370 = vmatpush1.bf16.msra.mxu0 %v254
    %371 = vmatprep.subr.bf16.mxu0 0
    %372 = vmatpush1.bf16.msra.mxu0 %v255
    %373 = vmatprep.subr.bf16.mxu0 0
    %374 = vmatpush1.bf16.msra.mxu0 %v294
    %375 = vmatprep.subr.bf16.mxu0 0
    %376 = vmatpush1.bf16.msra.mxu0 0
    %377 = vmatprep.subr.bf16.mxu0 0
    %378 = vmatpush1.bf16.msra.mxu0 0
    %379 = vmatprep.subr.bf16.mxu0 0
    %380 = vmatpush1.bf16.msra.mxu0 0
    %381 = vmatprep.subr.bf16.mxu0 0
    %382 = vmatpush1.bf16.msra.mxu0 0
    %383 = vmatprep.subr.bf16.mxu0 0
    %384 = vmatpush1.bf16.msra.mxu0 0
    %385 = vmatprep.subr.bf16.mxu0 0
    %386 = vmatpush1.bf16.msra.mxu0 0
    %387 = vmatprep.subr.bf16.mxu0 0
    %388 = vmatpush1.bf16.msra.mxu0 0
    %389 = vmatprep.subr.bf16.mxu0 0
    %390 = vmatpush1.bf16.msra.mxu0 0
    %391 = vmatprep.subr.bf16.mxu0 0
    %392 = vmatpush1.bf16.msra.mxu0 0
    %393 = vmatprep.mubr.bf16.mxu0 0
    %394 = vmatmul.mubr.bf16.gmra.mrb[0].mxu0 %v281
    %v395 = vpop.f32.mrb[0].mxu0
    %v396 = vadd.f32 %v331, %v395
    %v397 = vpop.f32.mrb[0].mxu0
    %v398 = vpop.f32.mrb[0].mxu0
    %v399 = vadd.f32 %v334, %v398
    %v400 = vpop.f32.mrb[0].mxu0
    %401 = vmatprep.mubr.bf16.mxu0 0
    %402 = vmatmul.mubr.bf16.gmra.mrb[0].mxu0 %v284
    %v403 = vpop.f32.mrb[0].mxu0
    %v404 = vadd.f32 %v339, %v403
    %v405 = vpop.f32.mrb[0].mxu0
    %v406 = vpop.f32.mrb[0].mxu0
    %v407 = vadd.f32 %v342, %v406
    %v408 = vpop.f32.mrb[0].mxu0
    %409 = vmatprep.mubr.bf16.mxu0 0
    %410 = vmatmul.mubr.bf16.gmra.mrb[0].mxu0 %v287
    %v411 = vpop.f32.mrb[0].mxu0
    %v412 = vadd.f32 %v347, %v411
    %v413 = vpop.f32.mrb[0].mxu0
    %v414 = vpop.f32.mrb[0].mxu0
    %v415 = vadd.f32 %v350, %v414
    %v416 = vpop.f32.mrb[0].mxu0
    %417 = vmatprep.mubr.bf16.mxu0 0
    %418 = vmatmul.mubr.bf16.gmra.mrb[0].mxu0 %v290
    %v419 = vpop.f32.mrb[0].mxu0
    %v420 = vadd.f32 %v355, %v419
    %v421 = vpop.f32.mrb[0].mxu0
    %v422 = vpop.f32.mrb[0].mxu0
    %v423 = vadd.f32 %v358, %v422
    %v424 = vpop.f32.mrb[0].mxu0
    %425 = vdwg.mxu0
    %426 = vst [vmem:[#allocation2] sm:$0xff] %v396
    %427 = vst [vmem:[#allocation2 + $0x8] sm:$0xff] %v399
    %428 = vst [vmem:[#allocation2 + $0x10] sm:$0xff] %v404
    %429 = vst [vmem:[#allocation2 + $0x18] sm:$0xff] %v407
    %430 = vst [vmem:[#allocation2 + $0x20] sm:$0xff] %v412
    %431 = vst [vmem:[#allocation2 + $0x28] sm:$0xff] %v415
    %432 = vst [vmem:[#allocation2 + $0x30] sm:$0xff] %v420
    %433 = vst [vmem:[#allocation2 + $0x38] sm:$0xff] %v423
    // Predicated region
    $region14: #{spatial_detail_enhancement.5} parent=1 // pred_check
      _
    $region15: #{spatial_detail_enhancement.5} parent=1 // pred_check_branch
      %435 = sbr.rel (0) target = $region17
    $region16: #{spatial_detail_enhancement.5} parent=1 // pred_region
      %s437 = ssub.s32 1024, 1024
      %438 = vsyncadd [#allocation3], %s437
      %s439 = sshll.u32 [#allocation2], 4
      %s440 = int_to_ptr.vmem [resolvable:$true] %s439
      %445 = dma.vmem_to_hbm [thread:$0]  %s440, 1024, %s3, [#allocation3], 128, 128, 8
    $region17: #{spatial_detail_enhancement.5} parent=1 // pred_fallthru
      _
    // Predicated region
    $region18: #{spatial_detail_enhancement.5} parent=1 // pred_check
      _
    $region19: #{spatial_detail_enhancement.5} parent=1 // pred_check_branch
      %447 = sbr.rel (0) target = $region21
    $region20: #{spatial_detail_enhancement.5} parent=1 // pred_region
      %448 = dma.done [#allocation3], 1024
    $region21: #{spatial_detail_enhancement.5} parent=1 // pred_fallthru
      _
    %449 = vsyncpa [#allocation3], 1

</llo_original>
